<compile_context>
chip_gen: v7x
topology: tpu7x:2x2x1
jax: 0.10.0
libtpu: 0.0.40
codegen_flags: <defaults>
</compile_context>

<pallas_src>
import math

import jax
import jax.numpy as jnp
from jax import lax
from jax.experimental import pallas as pl
from jax.experimental.pallas import tpu as pltpu


def _make_lstm_kernel(T_pad, Bp, C, L, H, has_wxr):
    """Builds the single-invocation LSTM-stack kernel body for static shapes.

    Row layout of x / xp scratch / out: row = t * Bp + b  (time-major).
    """
    R = C * Bp                    # rows per chunk, always a multiple of 8
    num_chunks = T_pad // C

    def kernel(*refs):
        if has_wxr:
            x_ref, wx0_ref, wxr_ref, wh_ref, b_ref, out_ref, xp_sc = refs
        else:
            x_ref, wx0_ref, wh_ref, b_ref, out_ref, xp_sc = refs
            wxr_ref = None

        # Layer-0 input projection for every timestep in ONE lane-dense MXU matmul
        # (bias b_ih + b_hh already folded in).
        xp_sc[...] = (
            jnp.dot(x_ref[...], wx0_ref[...], preferred_element_type=jnp.float32)
            + b_ref[0]
        )

        for l in range(L):                         # static layer loop
            wh_l = wh_ref[l]                       # (H, 4H), resident in VMEM
            is_last = l == L - 1
            if not is_last:
                wxr_l = wxr_ref[l]                 # (H, 4H)
                b_next = b_ref[l + 1]              # (1, 4H)
            else:
                wxr_l = None
                b_next = None

            def chunk(k, carry, wh_l=wh_l, wxr_l=wxr_l, b_next=b_next,
                      is_last=is_last):
                h, c = carry
                row0 = pl.multiple_of(k * R, R)            # 8-aligned sublane offset
                xp_chunk = xp_sc[pl.ds(row0, R), :]        # one aligned (R, 4H) load
                h_steps = []
                for ci in range(C):                        # bounded static unroll
                    g_lin = xp_chunk[ci * Bp:(ci + 1) * Bp, :] + jnp.dot(
                        h, wh_l, preferred_element_type=jnp.float32)
                    # Full-vreg transcendentals (EUP), gate extraction afterwards.
                    sg = jax.nn.sigmoid(g_lin)
                    tg = jnp.tanh(g_lin)
                    i_g = sg[:, 0 * H:1 * H]
                    f_g = sg[:, 1 * H:2 * H]
                    g_g = tg[:, 2 * H:3 * H]
                    o_g = sg[:, 3 * H:4 * H]
                    c = f_g * c + i_g * g_g
                    h = o_g * jnp.tanh(c)
                    h_steps.append(h)
                h_chunk = h_steps[0] if C == 1 else jnp.concatenate(h_steps, axis=0)
                if is_last:
                    # Last layer: write hidden states straight into the output slab.
                    out_ref[pl.ds(row0, R), :] = h_chunk
                else:
                    # Interleave the next layer's input projection into this layer's
                    # time loop.  In-place overwrite is safe: these rows were already
                    # consumed at the top of this chunk.
                    xp_sc[pl.ds(row0, R), :] = (
                        jnp.dot(h_chunk, wxr_l, preferred_element_type=jnp.float32)
                        + b_next
                    )
                return (h, c)

            zeros = jnp.zeros((Bp, H), jnp.float32)        # h0 = c0 = 0 (as in module)
            lax.fori_loop(0, num_chunks, chunk, (zeros, zeros),
                          unroll=min(num_chunks, 4))

    return kernel


def _pad_batch(B):
    """Smallest Bp >= B such that Bp divides 8 or is a multiple of 8."""
    if B >= 8:
        return ((B + 7) // 8) * 8
    p = 1
    while p < B:
        p *= 2
    return p            # 1, 2, 4 or 8


@jax.jit
def _lstm4_forward(x, wx0, wxr, wh, b):
    """x: (B, T, D) batch-first.  Returns (B, T, H) last-layer hidden states."""
    B, T, D = x.shape
    L, H, _ = wh.shape

    Bp = _pad_batch(B)
    C = max(1, 8 // Bp)                              # timesteps per aligned 8-row chunk
    T_pad = ((T + C - 1) // C) * C

    # Time-major, batch/time padded, flattened 2-D slab: row = t * Bp + b.
    x_t = jnp.transpose(x, (1, 0, 2)).astype(jnp.float32)         # (T, B, D)
    x_t = jnp.pad(x_t, ((0, T_pad - T), (0, Bp - B), (0, 0)))
    x_flat = x_t.reshape(T_pad * Bp, D)

    has_wxr = wxr is not None
    kernel = _make_lstm_kernel(T_pad, Bp, C, L, H, has_wxr)
    operands = (x_flat, wx0) + ((wxr,) if has_wxr else ()) + (wh, b)

    # Explicit scoped-VMEM budget: operands + output + scratch, with headroom,
    # capped at 64 MiB so the request is valid on v7x as well.
    n_rows = T_pad * Bp
    est = 4 * (x_flat.size + wx0.size + (wxr.size if has_wxr else 0)
               + wh.size + b.size + n_rows * H + n_rows * 4 * H)
    vmem_limit = int(min(max(2 * est + (4 << 20), 32 << 20), 64 << 20))

    out_flat = pl.pallas_call(
        kernel,
        out_shape=jax.ShapeDtypeStruct((n_rows, H), jnp.float32),
        in_specs=[pl.BlockSpec(memory_space=pltpu.MemorySpace.VMEM)] * len(operands),
        out_specs=pl.BlockSpec(memory_space=pltpu.MemorySpace.VMEM),
        scratch_shapes=[pltpu.VMEM((n_rows, 4 * H), jnp.float32)],  # gate projections
        compiler_params=pltpu.CompilerParams(vmem_limit_bytes=vmem_limit),
    )(*operands)

    out = out_flat.reshape(T_pad, Bp, H)[:T, :B]                  # drop padding
    return jnp.transpose(out, (1, 0, 2))                          # (B, T, H)


class LSTM4Pallas:
    """JAX/Pallas re-implementation of the DCEM LSTM4 forward pass."""

    def __init__(self, input_dim, output_dim, num_layers, size, key):
        self.input_dim = input_dim
        self.output_dim = output_dim
        self.size = size
        self.num_layers = num_layers
        self.hidden = output_dim + size

        H = self.hidden
        bound = 1.0 / math.sqrt(H)
        raw = []
        for layer in range(num_layers):
            d_in = input_dim if layer == 0 else H
            key, k1, k2, k3, k4 = jax.random.split(key, 5)
            # PyTorch stores W_ih (4H, d_in) / W_hh (4H, H), gate order [i, f, g, o].
            w_ih = jax.random.uniform(k1, (4 * H, d_in), jnp.float32, -bound, bound)
            w_hh = jax.random.uniform(k2, (4 * H, H), jnp.float32, -bound, bound)
            b_ih = jax.random.uniform(k3, (4 * H,), jnp.float32, -bound, bound)
            b_hh = jax.random.uniform(k4, (4 * H,), jnp.float32, -bound, bound)
            raw.append((w_ih, w_hh, b_ih, b_hh))
        self.raw = raw

        # Packed, transposed operands so the kernel computes x @ Wx / h @ Wh directly.
        self.wx0 = raw[0][0].T                                               # (D, 4H)
        if num_layers > 1:
            self.wxr = jnp.stack([raw[l][0].T for l in range(1, num_layers)])  # (L-1, H, 4H)
        else:
            self.wxr = None                                                  # no dummy operand
        self.wh = jnp.stack([raw[l][1].T for l in range(num_layers)])        # (L, H, 4H)
        self.b = jnp.stack([(raw[l][2] + raw[l][3]).reshape(1, 4 * H)
                            for l in range(num_layers)])                     # (L, 1, 4H)

    def __call__(self, x):
        return _lstm4_forward(x, self.wx0, self.wxr, self.wh, self.b)

    def reference(self, x):
        """Pure-JAX reference (lax.scan) with identical PyTorch LSTM semantics."""
        H = self.hidden
        cur = jnp.transpose(x, (1, 0, 2)).astype(jnp.float32)     # (T, B, D)
        B = cur.shape[1]
        for (w_ih, w_hh, b_ih, b_hh) in self.raw:
            def step(carry, x_t, w_ih=w_ih, w_hh=w_hh, b_ih=b_ih, b_hh=b_hh):
                h, c = carry
                gates = x_t @ w_ih.T + b_ih + h @ w_hh.T + b_hh
                i = jax.nn.sigmoid(gates[:, 0 * H:1 * H])
                f = jax.nn.sigmoid(gates[:, 1 * H:2 * H])
                g = jnp.tanh(gates[:, 2 * H:3 * H])
                o = jax.nn.sigmoid(gates[:, 3 * H:4 * H])
                c = f * c + i * g
                h = o * jnp.tanh(c)
                return (h, c), h

            init = (jnp.zeros((B, H), jnp.float32), jnp.zeros((B, H), jnp.float32))
            _, cur = lax.scan(step, init, cur)
        return jnp.transpose(cur, (1, 0, 2))


if __name__ == "__main__":
    # Small shapes consistent with the module's forward: x is (batch, seq, input_dim).
    B, T = 2, 8
    input_dim, output_dim, size, num_layers = 16, 24, 8, 2   # hidden = 32

    key = jax.random.PRNGKey(0)
    key, kx, kp = jax.random.split(key, 3)
    x = jax.random.normal(kx, (B, T, input_dim), jnp.float32)

    model = LSTM4Pallas(input_dim, output_dim, num_layers, size, kp)

    out = jax.block_until_ready(model(x))
    ref = jax.block_until_ready(model.reference(x))

    assert out.shape == (B, T, output_dim + size)
    assert jnp.allclose(out, ref, atol=1e-4, rtol=1e-4), "mismatch vs reference"

    print("KERNEL_OK")
</pallas_src>

<mosaic_0001>
module attributes {stable_mosaic.version = 11 : i64} {
  func.func @kernel(%arg0: memref<16x16xf32, #tpu.memory_space<vmem>>, %arg1: memref<16x128xf32, #tpu.memory_space<vmem>>, %arg2: memref<1x32x128xf32, #tpu.memory_space<vmem>>, %arg3: memref<2x32x128xf32, #tpu.memory_space<vmem>>, %arg4: memref<2x1x128xf32, #tpu.memory_space<vmem>>, %arg5: memref<16x32xf32, #tpu.memory_space<vmem>>, %arg6: memref<16x128xf32, #tpu.memory_space<vmem>>) attributes {dimension_semantics = [], scalar_prefetch = 0 : i64, scratch_operands = 1 : i64, tpu.core_type = #tpu.core_type<tc>} {
    %c0 = arith.constant 0 : index
    %c0_0 = arith.constant 0 : index
    %0 = vector.load %arg0[%c0, %c0_0] : memref<16x16xf32, #tpu.memory_space<vmem>>, vector<16x16xf32>
    %c0_1 = arith.constant 0 : index
    %c0_2 = arith.constant 0 : index
    %1 = vector.load %arg1[%c0_1, %c0_2] : memref<16x128xf32, #tpu.memory_space<vmem>>, vector<16x128xf32>
    %cst = arith.constant dense<0.000000e+00> : vector<16x128xf32>
    %2 = tpu.matmul %0, %1, %cst {dimension_numbers = #tpu.dot_dimension_numbers<[1], [0], [0], [1], [0, 0, 1, 1], [], []>} : vector<16x16xf32>, vector<16x128xf32>, vector<16x128xf32> -> vector<16x128xf32>
    %c0_3 = arith.constant 0 : index
    %c0_4 = arith.constant 0 : index
    %c0_5 = arith.constant 0 : index
    %3 = vector.load %arg4[%c0_3, %c0_4, %c0_5] : memref<2x1x128xf32, #tpu.memory_space<vmem>>, vector<1x1x128xf32>
    %4 = vector.shape_cast %3 : vector<1x1x128xf32> to vector<1x128xf32>
    %5 = vector.broadcast %4 : vector<1x128xf32> to vector<16x128xf32>
    %6 = arith.addf %2, %5 : vector<16x128xf32>
    %c0_6 = arith.constant 0 : index
    %c0_7 = arith.constant 0 : index
    %7 = vector.load %arg6[%c0_6, %c0_7] : memref<16x128xf32, #tpu.memory_space<vmem>>, vector<16x128xf32>
    tpu.vector_store %arg6[%c0_6, %c0_7], %6 {strides = array<i32>} : memref<16x128xf32, #tpu.memory_space<vmem>>, vector<16x128xf32>,
    %c0_8 = arith.constant 0 : index
    %c0_9 = arith.constant 0 : index
    %c0_10 = arith.constant 0 : index
    %8 = vector.load %arg3[%c0_8, %c0_9, %c0_10] : memref<2x32x128xf32, #tpu.memory_space<vmem>>, vector<1x32x128xf32>
    %9 = vector.shape_cast %8 : vector<1x32x128xf32> to vector<32x128xf32>
    %c0_11 = arith.constant 0 : index
    %c0_12 = arith.constant 0 : index
    %c0_13 = arith.constant 0 : index
    %10 = vector.load %arg2[%c0_11, %c0_12, %c0_13] : memref<1x32x128xf32, #tpu.memory_space<vmem>>, vector<1x32x128xf32>
    %11 = vector.shape_cast %10 : vector<1x32x128xf32> to vector<32x128xf32>
    %c1 = arith.constant 1 : index
    %c0_14 = arith.constant 0 : index
    %c0_15 = arith.constant 0 : index
    %12 = vector.load %arg4[%c1, %c0_14, %c0_15] : memref<2x1x128xf32, #tpu.memory_space<vmem>>, vector<1x1x128xf32>
    %13 = vector.shape_cast %12 : vector<1x1x128xf32> to vector<1x128xf32>
    %cst_16 = arith.constant 0.000000e+00 : f32
    %14 = vector.broadcast %cst_16 : f32 to vector<2x32xf32>
    %c0_i32 = arith.constant 0 : i32
    %c8_i32 = arith.constant 8 : i32
    %15 = arith.muli %c0_i32, %c8_i32 : i32
    %16 = tpu.assume_multiple %15, 8 : i32
    %17 = arith.index_cast %16 : i32 to index
    %c0_17 = arith.constant 0 : index
    %18 = vector.load %arg6[%17, %c0_17] : memref<16x128xf32, #tpu.memory_space<vmem>>, vector<8x128xf32>
    %19 = vector.extract_strided_slice %18 {offsets = [0, 0], sizes = [2, 128], strides = [1, 1]} : vector<8x128xf32> to vector<2x128xf32>
    %cst_18 = arith.constant dense<0.000000e+00> : vector<2x128xf32>
    %20 = tpu.matmul %14, %9, %cst_18 {dimension_numbers = #tpu.dot_dimension_numbers<[1], [0], [0], [1], [0, 0, 1, 1], [], []>} : vector<2x32xf32>, vector<32x128xf32>, vector<2x128xf32> -> vector<2x128xf32>
    %21 = arith.addf %19, %20 : vector<2x128xf32>
    %22 = arith.negf %21 : vector<2x128xf32>
    %23 = math.exp %22 : vector<2x128xf32>
    %cst_19 = arith.constant 1.000000e+00 : f32
    %24 = vector.broadcast %cst_19 : f32 to vector<2x128xf32>
    %25 = arith.addf %24, %23 : vector<2x128xf32>
    %26 = arith.divf %24, %25 : vector<2x128xf32>
    %27 = math.tanh %21 : vector<2x128xf32>
    %28 = vector.extract_strided_slice %26 {offsets = [0, 0], sizes = [2, 32], strides = [1, 1]} : vector<2x128xf32> to vector<2x32xf32>
    %29 = vector.extract_strided_slice %26 {offsets = [0, 32], sizes = [2, 32], strides = [1, 1]} : vector<2x128xf32> to vector<2x32xf32>
    %30 = vector.extract_strided_slice %27 {offsets = [0, 64], sizes = [2, 32], strides = [1, 1]} : vector<2x128xf32> to vector<2x32xf32>
    %31 = vector.extract_strided_slice %26 {offsets = [0, 96], sizes = [2, 32], strides = [1, 1]} : vector<2x128xf32> to vector<2x32xf32>
    %32 = arith.mulf %29, %14 : vector<2x32xf32>
    %33 = arith.mulf %28, %30 : vector<2x32xf32>
    %34 = arith.addf %32, %33 : vector<2x32xf32>
    %35 = math.tanh %34 : vector<2x32xf32>
    %36 = arith.mulf %31, %35 : vector<2x32xf32>
    %37 = vector.extract_strided_slice %18 {offsets = [2, 0], sizes = [2, 128], strides = [1, 1]} : vector<8x128xf32> to vector<2x128xf32>
    %cst_20 = arith.constant dense<0.000000e+00> : vector<2x128xf32>
    %38 = tpu.matmul %36, %9, %cst_20 {dimension_numbers = #tpu.dot_dimension_numbers<[1], [0], [0], [1], [0, 0, 1, 1], [], []>} : vector<2x32xf32>, vector<32x128xf32>, vector<2x128xf32> -> vector<2x128xf32>
    %39 = arith.addf %37, %38 : vector<2x128xf32>
    %40 = arith.negf %39 : vector<2x128xf32>
    %41 = math.exp %40 : vector<2x128xf32>
    %cst_21 = arith.constant 1.000000e+00 : f32
    %42 = vector.broadcast %cst_21 : f32 to vector<2x128xf32>
    %43 = arith.addf %42, %41 : vector<2x128xf32>
    %44 = arith.divf %42, %43 : vector<2x128xf32>
    %45 = math.tanh %39 : vector<2x128xf32>
    %46 = vector.extract_strided_slice %44 {offsets = [0, 0], sizes = [2, 32], strides = [1, 1]} : vector<2x128xf32> to vector<2x32xf32>
    %47 = vector.extract_strided_slice %44 {offsets = [0, 32], sizes = [2, 32], strides = [1, 1]} : vector<2x128xf32> to vector<2x32xf32>
    %48 = vector.extract_strided_slice %45 {offsets = [0, 64], sizes = [2, 32], strides = [1, 1]} : vector<2x128xf32> to vector<2x32xf32>
    %49 = vector.extract_strided_slice %44 {offsets = [0, 96], sizes = [2, 32], strides = [1, 1]} : vector<2x128xf32> to vector<2x32xf32>
    %50 = arith.mulf %47, %34 : vector<2x32xf32>
    %51 = arith.mulf %46, %48 : vector<2x32xf32>
    %52 = arith.addf %50, %51 : vector<2x32xf32>
    %53 = math.tanh %52 : vector<2x32xf32>
    %54 = arith.mulf %49, %53 : vector<2x32xf32>
    %55 = vector.extract_strided_slice %18 {offsets = [4, 0], sizes = [2, 128], strides = [1, 1]} : vector<8x128xf32> to vector<2x128xf32>
    %cst_22 = arith.constant dense<0.000000e+00> : vector<2x128xf32>
    %56 = tpu.matmul %54, %9, %cst_22 {dimension_numbers = #tpu.dot_dimension_numbers<[1], [0], [0], [1], [0, 0, 1, 1], [], []>} : vector<2x32xf32>, vector<32x128xf32>, vector<2x128xf32> -> vector<2x128xf32>
    %57 = arith.addf %55, %56 : vector<2x128xf32>
    %58 = arith.negf %57 : vector<2x128xf32>
    %59 = math.exp %58 : vector<2x128xf32>
    %cst_23 = arith.constant 1.000000e+00 : f32
    %60 = vector.broadcast %cst_23 : f32 to vector<2x128xf32>
    %61 = arith.addf %60, %59 : vector<2x128xf32>
    %62 = arith.divf %60, %61 : vector<2x128xf32>
    %63 = math.tanh %57 : vector<2x128xf32>
    %64 = vector.extract_strided_slice %62 {offsets = [0, 0], sizes = [2, 32], strides = [1, 1]} : vector<2x128xf32> to vector<2x32xf32>
    %65 = vector.extract_strided_slice %62 {offsets = [0, 32], sizes = [2, 32], strides = [1, 1]} : vector<2x128xf32> to vector<2x32xf32>
    %66 = vector.extract_strided_slice %63 {offsets = [0, 64], sizes = [2, 32], strides = [1, 1]} : vector<2x128xf32> to vector<2x32xf32>
    %67 = vector.extract_strided_slice %62 {offsets = [0, 96], sizes = [2, 32], strides = [1, 1]} : vector<2x128xf32> to vector<2x32xf32>
    %68 = arith.mulf %65, %52 : vector<2x32xf32>
    %69 = arith.mulf %64, %66 : vector<2x32xf32>
    %70 = arith.addf %68, %69 : vector<2x32xf32>
    %71 = math.tanh %70 : vector<2x32xf32>
    %72 = arith.mulf %67, %71 : vector<2x32xf32>
    %73 = vector.extract_strided_slice %18 {offsets = [6, 0], sizes = [2, 128], strides = [1, 1]} : vector<8x128xf32> to vector<2x128xf32>
    %cst_24 = arith.constant dense<0.000000e+00> : vector<2x128xf32>
    %74 = tpu.matmul %72, %9, %cst_24 {dimension_numbers = #tpu.dot_dimension_numbers<[1], [0], [0], [1], [0, 0, 1, 1], [], []>} : vector<2x32xf32>, vector<32x128xf32>, vector<2x128xf32> -> vector<2x128xf32>
    %75 = arith.addf %73, %74 : vector<2x128xf32>
    %76 = arith.negf %75 : vector<2x128xf32>
    %77 = math.exp %76 : vector<2x128xf32>
    %cst_25 = arith.constant 1.000000e+00 : f32
    %78 = vector.broadcast %cst_25 : f32 to vector<2x128xf32>
    %79 = arith.addf %78, %77 : vector<2x128xf32>
    %80 = arith.divf %78, %79 : vector<2x128xf32>
    %81 = math.tanh %75 : vector<2x128xf32>
    %82 = vector.extract_strided_slice %80 {offsets = [0, 0], sizes = [2, 32], strides = [1, 1]} : vector<2x128xf32> to vector<2x32xf32>
    %83 = vector.extract_strided_slice %80 {offsets = [0, 32], sizes = [2, 32], strides = [1, 1]} : vector<2x128xf32> to vector<2x32xf32>
    %84 = vector.extract_strided_slice %81 {offsets = [0, 64], sizes = [2, 32], strides = [1, 1]} : vector<2x128xf32> to vector<2x32xf32>
    %85 = vector.extract_strided_slice %80 {offsets = [0, 96], sizes = [2, 32], strides = [1, 1]} : vector<2x128xf32> to vector<2x32xf32>
    %86 = arith.mulf %83, %70 : vector<2x32xf32>
    %87 = arith.mulf %82, %84 : vector<2x32xf32>
    %88 = arith.addf %86, %87 : vector<2x32xf32>
    %89 = math.tanh %88 : vector<2x32xf32>
    %90 = arith.mulf %85, %89 : vector<2x32xf32>
    %91 = tpu.concatenate %36, %54, %72, %90 in 0 : vector<2x32xf32>, vector<2x32xf32>, vector<2x32xf32>, vector<2x32xf32> -> vector<8x32xf32>
    %cst_26 = arith.constant dense<0.000000e+00> : vector<8x128xf32>
    %92 = tpu.matmul %91, %11, %cst_26 {dimension_numbers = #tpu.dot_dimension_numbers<[1], [0], [0], [1], [0, 0, 1, 1], [], []>} : vector<8x32xf32>, vector<32x128xf32>, vector<8x128xf32> -> vector<8x128xf32>
    %93 = vector.broadcast %13 : vector<1x128xf32> to vector<8x128xf32>
    %94 = arith.addf %92, %93 : vector<8x128xf32>
    %95 = arith.index_cast %16 : i32 to index
    %c0_27 = arith.constant 0 : index
    %96 = vector.load %arg6[%95, %c0_27] : memref<16x128xf32, #tpu.memory_space<vmem>>, vector<8x128xf32>
    tpu.vector_store %arg6[%95, %c0_27], %94 {strides = array<i32>} : memref<16x128xf32, #tpu.memory_space<vmem>>, vector<8x128xf32>,
    %c1_i32 = arith.constant 1 : i32
    %c8_i32_28 = arith.constant 8 : i32
    %97 = arith.muli %c1_i32, %c8_i32_28 : i32
    %98 = tpu.assume_multiple %97, 8 : i32
    %99 = arith.index_cast %98 : i32 to index
    %c0_29 = arith.constant 0 : index
    %100 = vector.load %arg6[%99, %c0_29] : memref<16x128xf32, #tpu.memory_space<vmem>>, vector<8x128xf32>
    %101 = vector.extract_strided_slice %100 {offsets = [0, 0], sizes = [2, 128], strides = [1, 1]} : vector<8x128xf32> to vector<2x128xf32>
    %cst_30 = arith.constant dense<0.000000e+00> : vector<2x128xf32>
    %102 = tpu.matmul %90, %9, %cst_30 {dimension_numbers = #tpu.dot_dimension_numbers<[1], [0], [0], [1], [0, 0, 1, 1], [], []>} : vector<2x32xf32>, vector<32x128xf32>, vector<2x128xf32> -> vector<2x128xf32>
    %103 = arith.addf %101, %102 : vector<2x128xf32>
    %104 = arith.negf %103 : vector<2x128xf32>
    %105 = math.exp %104 : vector<2x128xf32>
    %cst_31 = arith.constant 1.000000e+00 : f32
    %106 = vector.broadcast %cst_31 : f32 to vector<2x128xf32>
    %107 = arith.addf %106, %105 : vector<2x128xf32>
    %108 = arith.divf %106, %107 : vector<2x128xf32>
    %109 = math.tanh %103 : vector<2x128xf32>
    %110 = vector.extract_strided_slice %108 {offsets = [0, 0], sizes = [2, 32], strides = [1, 1]} : vector<2x128xf32> to vector<2x32xf32>
    %111 = vector.extract_strided_slice %108 {offsets = [0, 32], sizes = [2, 32], strides = [1, 1]} : vector<2x128xf32> to vector<2x32xf32>
    %112 = vector.extract_strided_slice %109 {offsets = [0, 64], sizes = [2, 32], strides = [1, 1]} : vector<2x128xf32> to vector<2x32xf32>
    %113 = vector.extract_strided_slice %108 {offsets = [0, 96], sizes = [2, 32], strides = [1, 1]} : vector<2x128xf32> to vector<2x32xf32>
    %114 = arith.mulf %111, %88 : vector<2x32xf32>
    %115 = arith.mulf %110, %112 : vector<2x32xf32>
    %116 = arith.addf %114, %115 : vector<2x32xf32>
    %117 = math.tanh %116 : vector<2x32xf32>
    %118 = arith.mulf %113, %117 : vector<2x32xf32>
    %119 = vector.extract_strided_slice %100 {offsets = [2, 0], sizes = [2, 128], strides = [1, 1]} : vector<8x128xf32> to vector<2x128xf32>
    %cst_32 = arith.constant dense<0.000000e+00> : vector<2x128xf32>
    %120 = tpu.matmul %118, %9, %cst_32 {dimension_numbers = #tpu.dot_dimension_numbers<[1], [0], [0], [1], [0, 0, 1, 1], [], []>} : vector<2x32xf32>, vector<32x128xf32>, vector<2x128xf32> -> vector<2x128xf32>
    %121 = arith.addf %119, %120 : vector<2x128xf32>
    %122 = arith.negf %121 : vector<2x128xf32>
    %123 = math.exp %122 : vector<2x128xf32>
    %cst_33 = arith.constant 1.000000e+00 : f32
    %124 = vector.broadcast %cst_33 : f32 to vector<2x128xf32>
    %125 = arith.addf %124, %123 : vector<2x128xf32>
    %126 = arith.divf %124, %125 : vector<2x128xf32>
    %127 = math.tanh %121 : vector<2x128xf32>
    %128 = vector.extract_strided_slice %126 {offsets = [0, 0], sizes = [2, 32], strides = [1, 1]} : vector<2x128xf32> to vector<2x32xf32>
    %129 = vector.extract_strided_slice %126 {offsets = [0, 32], sizes = [2, 32], strides = [1, 1]} : vector<2x128xf32> to vector<2x32xf32>
    %130 = vector.extract_strided_slice %127 {offsets = [0, 64], sizes = [2, 32], strides = [1, 1]} : vector<2x128xf32> to vector<2x32xf32>
    %131 = vector.extract_strided_slice %126 {offsets = [0, 96], sizes = [2, 32], strides = [1, 1]} : vector<2x128xf32> to vector<2x32xf32>
    %132 = arith.mulf %129, %116 : vector<2x32xf32>
    %133 = arith.mulf %128, %130 : vector<2x32xf32>
    %134 = arith.addf %132, %133 : vector<2x32xf32>
    %135 = math.tanh %134 : vector<2x32xf32>
    %136 = arith.mulf %131, %135 : vector<2x32xf32>
    %137 = vector.extract_strided_slice %100 {offsets = [4, 0], sizes = [2, 128], strides = [1, 1]} : vector<8x128xf32> to vector<2x128xf32>
    %cst_34 = arith.constant dense<0.000000e+00> : vector<2x128xf32>
    %138 = tpu.matmul %136, %9, %cst_34 {dimension_numbers = #tpu.dot_dimension_numbers<[1], [0], [0], [1], [0, 0, 1, 1], [], []>} : vector<2x32xf32>, vector<32x128xf32>, vector<2x128xf32> -> vector<2x128xf32>
    %139 = arith.addf %137, %138 : vector<2x128xf32>
    %140 = arith.negf %139 : vector<2x128xf32>
    %141 = math.exp %140 : vector<2x128xf32>
    %cst_35 = arith.constant 1.000000e+00 : f32
    %142 = vector.broadcast %cst_35 : f32 to vector<2x128xf32>
    %143 = arith.addf %142, %141 : vector<2x128xf32>
    %144 = arith.divf %142, %143 : vector<2x128xf32>
    %145 = math.tanh %139 : vector<2x128xf32>
    %146 = vector.extract_strided_slice %144 {offsets = [0, 0], sizes = [2, 32], strides = [1, 1]} : vector<2x128xf32> to vector<2x32xf32>
    %147 = vector.extract_strided_slice %144 {offsets = [0, 32], sizes = [2, 32], strides = [1, 1]} : vector<2x128xf32> to vector<2x32xf32>
    %148 = vector.extract_strided_slice %145 {offsets = [0, 64], sizes = [2, 32], strides = [1, 1]} : vector<2x128xf32> to vector<2x32xf32>
    %149 = vector.extract_strided_slice %144 {offsets = [0, 96], sizes = [2, 32], strides = [1, 1]} : vector<2x128xf32> to vector<2x32xf32>
    %150 = arith.mulf %147, %134 : vector<2x32xf32>
    %151 = arith.mulf %146, %148 : vector<2x32xf32>
    %152 = arith.addf %150, %151 : vector<2x32xf32>
    %153 = math.tanh %152 : vector<2x32xf32>
    %154 = arith.mulf %149, %153 : vector<2x32xf32>
    %155 = vector.extract_strided_slice %100 {offsets = [6, 0], sizes = [2, 128], strides = [1, 1]} : vector<8x128xf32> to vector<2x128xf32>
    %cst_36 = arith.constant dense<0.000000e+00> : vector<2x128xf32>
    %156 = tpu.matmul %154, %9, %cst_36 {dimension_numbers = #tpu.dot_dimension_numbers<[1], [0], [0], [1], [0, 0, 1, 1], [], []>} : vector<2x32xf32>, vector<32x128xf32>, vector<2x128xf32> -> vector<2x128xf32>
    %157 = arith.addf %155, %156 : vector<2x128xf32>
    %158 = arith.negf %157 : vector<2x128xf32>
    %159 = math.exp %158 : vector<2x128xf32>
    %cst_37 = arith.constant 1.000000e+00 : f32
    %160 = vector.broadcast %cst_37 : f32 to vector<2x128xf32>
    %161 = arith.addf %160, %159 : vector<2x128xf32>
    %162 = arith.divf %160, %161 : vector<2x128xf32>
    %163 = math.tanh %157 : vector<2x128xf32>
    %164 = vector.extract_strided_slice %162 {offsets = [0, 0], sizes = [2, 32], strides = [1, 1]} : vector<2x128xf32> to vector<2x32xf32>
    %165 = vector.extract_strided_slice %162 {offsets = [0, 32], sizes = [2, 32], strides = [1, 1]} : vector<2x128xf32> to vector<2x32xf32>
    %166 = vector.extract_strided_slice %163 {offsets = [0, 64], sizes = [2, 32], strides = [1, 1]} : vector<2x128xf32> to vector<2x32xf32>
    %167 = vector.extract_strided_slice %162 {offsets = [0, 96], sizes = [2, 32], strides = [1, 1]} : vector<2x128xf32> to vector<2x32xf32>
    %168 = arith.mulf %165, %152 : vector<2x32xf32>
    %169 = arith.mulf %164, %166 : vector<2x32xf32>
    %170 = arith.addf %168, %169 : vector<2x32xf32>
    %171 = math.tanh %170 : vector<2x32xf32>
    %172 = arith.mulf %167, %171 : vector<2x32xf32>
    %173 = tpu.concatenate %118, %136, %154, %172 in 0 : vector<2x32xf32>, vector<2x32xf32>, vector<2x32xf32>, vector<2x32xf32> -> vector<8x32xf32>
    %cst_38 = arith.constant dense<0.000000e+00> : vector<8x128xf32>
    %174 = tpu.matmul %173, %11, %cst_38 {dimension_numbers = #tpu.dot_dimension_numbers<[1], [0], [0], [1], [0, 0, 1, 1], [], []>} : vector<8x32xf32>, vector<32x128xf32>, vector<8x128xf32> -> vector<8x128xf32>
    %175 = vector.broadcast %13 : vector<1x128xf32> to vector<8x128xf32>
    %176 = arith.addf %174, %175 : vector<8x128xf32>
    %177 = arith.index_cast %98 : i32 to index
    %c0_39 = arith.constant 0 : index
    %178 = vector.load %arg6[%177, %c0_39] : memref<16x128xf32, #tpu.memory_space<vmem>>, vector<8x128xf32>
    tpu.vector_store %arg6[%177, %c0_39], %176 {strides = array<i32>} : memref<16x128xf32, #tpu.memory_space<vmem>>, vector<8x128xf32>,
    %c2_i32 = arith.constant 2 : i32
    %c1_40 = arith.constant 1 : index
    %c0_41 = arith.constant 0 : index
    %c0_42 = arith.constant 0 : index
    %179 = vector.load %arg3[%c1_40, %c0_41, %c0_42] : memref<2x32x128xf32, #tpu.memory_space<vmem>>, vector<1x32x128xf32>
    %180 = vector.shape_cast %179 : vector<1x32x128xf32> to vector<32x128xf32>
    %cst_43 = arith.constant 0.000000e+00 : f32
    %181 = vector.broadcast %cst_43 : f32 to vector<2x32xf32>
    %c0_i32_44 = arith.constant 0 : i32
    %c8_i32_45 = arith.constant 8 : i32
    %182 = arith.muli %c0_i32_44, %c8_i32_45 : i32
    %183 = tpu.assume_multiple %182, 8 : i32
    %184 = arith.index_cast %183 : i32 to index
    %c0_46 = arith.constant 0 : index
    %185 = vector.load %arg6[%184, %c0_46] : memref<16x128xf32, #tpu.memory_space<vmem>>, vector<8x128xf32>
    %186 = vector.extract_strided_slice %185 {offsets = [0, 0], sizes = [2, 128], strides = [1, 1]} : vector<8x128xf32> to vector<2x128xf32>
    %cst_47 = arith.constant dense<0.000000e+00> : vector<2x128xf32>
    %187 = tpu.matmul %181, %180, %cst_47 {dimension_numbers = #tpu.dot_dimension_numbers<[1], [0], [0], [1], [0, 0, 1, 1], [], []>} : vector<2x32xf32>, vector<32x128xf32>, vector<2x128xf32> -> vector<2x128xf32>
    %188 = arith.addf %186, %187 : vector<2x128xf32>
    %189 = arith.negf %188 : vector<2x128xf32>
    %190 = math.exp %189 : vector<2x128xf32>
    %cst_48 = arith.constant 1.000000e+00 : f32
    %191 = vector.broadcast %cst_48 : f32 to vector<2x128xf32>
    %192 = arith.addf %191, %190 : vector<2x128xf32>
    %193 = arith.divf %191, %192 : vector<2x128xf32>
    %194 = math.tanh %188 : vector<2x128xf32>
    %195 = vector.extract_strided_slice %193 {offsets = [0, 0], sizes = [2, 32], strides = [1, 1]} : vector<2x128xf32> to vector<2x32xf32>
    %196 = vector.extract_strided_slice %193 {offsets = [0, 32], sizes = [2, 32], strides = [1, 1]} : vector<2x128xf32> to vector<2x32xf32>
    %197 = vector.extract_strided_slice %194 {offsets = [0, 64], sizes = [2, 32], strides = [1, 1]} : vector<2x128xf32> to vector<2x32xf32>
    %198 = vector.extract_strided_slice %193 {offsets = [0, 96], sizes = [2, 32], strides = [1, 1]} : vector<2x128xf32> to vector<2x32xf32>
    %199 = arith.mulf %196, %181 : vector<2x32xf32>
    %200 = arith.mulf %195, %197 : vector<2x32xf32>
    %201 = arith.addf %199, %200 : vector<2x32xf32>
    %202 = math.tanh %201 : vector<2x32xf32>
    %203 = arith.mulf %198, %202 : vector<2x32xf32>
    %204 = vector.extract_strided_slice %185 {offsets = [2, 0], sizes = [2, 128], strides = [1, 1]} : vector<8x128xf32> to vector<2x128xf32>
    %cst_49 = arith.constant dense<0.000000e+00> : vector<2x128xf32>
    %205 = tpu.matmul %203, %180, %cst_49 {dimension_numbers = #tpu.dot_dimension_numbers<[1], [0], [0], [1], [0, 0, 1, 1], [], []>} : vector<2x32xf32>, vector<32x128xf32>, vector<2x128xf32> -> vector<2x128xf32>
    %206 = arith.addf %204, %205 : vector<2x128xf32>
    %207 = arith.negf %206 : vector<2x128xf32>
    %208 = math.exp %207 : vector<2x128xf32>
    %cst_50 = arith.constant 1.000000e+00 : f32
    %209 = vector.broadcast %cst_50 : f32 to vector<2x128xf32>
    %210 = arith.addf %209, %208 : vector<2x128xf32>
    %211 = arith.divf %209, %210 : vector<2x128xf32>
    %212 = math.tanh %206 : vector<2x128xf32>
    %213 = vector.extract_strided_slice %211 {offsets = [0, 0], sizes = [2, 32], strides = [1, 1]} : vector<2x128xf32> to vector<2x32xf32>
    %214 = vector.extract_strided_slice %211 {offsets = [0, 32], sizes = [2, 32], strides = [1, 1]} : vector<2x128xf32> to vector<2x32xf32>
    %215 = vector.extract_strided_slice %212 {offsets = [0, 64], sizes = [2, 32], strides = [1, 1]} : vector<2x128xf32> to vector<2x32xf32>
    %216 = vector.extract_strided_slice %211 {offsets = [0, 96], sizes = [2, 32], strides = [1, 1]} : vector<2x128xf32> to vector<2x32xf32>
    %217 = arith.mulf %214, %201 : vector<2x32xf32>
    %218 = arith.mulf %213, %215 : vector<2x32xf32>
    %219 = arith.addf %217, %218 : vector<2x32xf32>
    %220 = math.tanh %219 : vector<2x32xf32>
    %221 = arith.mulf %216, %220 : vector<2x32xf32>
    %222 = vector.extract_strided_slice %185 {offsets = [4, 0], sizes = [2, 128], strides = [1, 1]} : vector<8x128xf32> to vector<2x128xf32>
    %cst_51 = arith.constant dense<0.000000e+00> : vector<2x128xf32>
    %223 = tpu.matmul %221, %180, %cst_51 {dimension_numbers = #tpu.dot_dimension_numbers<[1], [0], [0], [1], [0, 0, 1, 1], [], []>} : vector<2x32xf32>, vector<32x128xf32>, vector<2x128xf32> -> vector<2x128xf32>
    %224 = arith.addf %222, %223 : vector<2x128xf32>
    %225 = arith.negf %224 : vector<2x128xf32>
    %226 = math.exp %225 : vector<2x128xf32>
    %cst_52 = arith.constant 1.000000e+00 : f32
    %227 = vector.broadcast %cst_52 : f32 to vector<2x128xf32>
    %228 = arith.addf %227, %226 : vector<2x128xf32>
    %229 = arith.divf %227, %228 : vector<2x128xf32>
    %230 = math.tanh %224 : vector<2x128xf32>
    %231 = vector.extract_strided_slice %229 {offsets = [0, 0], sizes = [2, 32], strides = [1, 1]} : vector<2x128xf32> to vector<2x32xf32>
    %232 = vector.extract_strided_slice %229 {offsets = [0, 32], sizes = [2, 32], strides = [1, 1]} : vector<2x128xf32> to vector<2x32xf32>
    %233 = vector.extract_strided_slice %230 {offsets = [0, 64], sizes = [2, 32], strides = [1, 1]} : vector<2x128xf32> to vector<2x32xf32>
    %234 = vector.extract_strided_slice %229 {offsets = [0, 96], sizes = [2, 32], strides = [1, 1]} : vector<2x128xf32> to vector<2x32xf32>
    %235 = arith.mulf %232, %219 : vector<2x32xf32>
    %236 = arith.mulf %231, %233 : vector<2x32xf32>
    %237 = arith.addf %235, %236 : vector<2x32xf32>
    %238 = math.tanh %237 : vector<2x32xf32>
    %239 = arith.mulf %234, %238 : vector<2x32xf32>
    %240 = vector.extract_strided_slice %185 {offsets = [6, 0], sizes = [2, 128], strides = [1, 1]} : vector<8x128xf32> to vector<2x128xf32>
    %cst_53 = arith.constant dense<0.000000e+00> : vector<2x128xf32>
    %241 = tpu.matmul %239, %180, %cst_53 {dimension_numbers = #tpu.dot_dimension_numbers<[1], [0], [0], [1], [0, 0, 1, 1], [], []>} : vector<2x32xf32>, vector<32x128xf32>, vector<2x128xf32> -> vector<2x128xf32>
    %242 = arith.addf %240, %241 : vector<2x128xf32>
    %243 = arith.negf %242 : vector<2x128xf32>
    %244 = math.exp %243 : vector<2x128xf32>
    %cst_54 = arith.constant 1.000000e+00 : f32
    %245 = vector.broadcast %cst_54 : f32 to vector<2x128xf32>
    %246 = arith.addf %245, %244 : vector<2x128xf32>
    %247 = arith.divf %245, %246 : vector<2x128xf32>
    %248 = math.tanh %242 : vector<2x128xf32>
    %249 = vector.extract_strided_slice %247 {offsets = [0, 0], sizes = [2, 32], strides = [1, 1]} : vector<2x128xf32> to vector<2x32xf32>
    %250 = vector.extract_strided_slice %247 {offsets = [0, 32], sizes = [2, 32], strides = [1, 1]} : vector<2x128xf32> to vector<2x32xf32>
    %251 = vector.extract_strided_slice %248 {offsets = [0, 64], sizes = [2, 32], strides = [1, 1]} : vector<2x128xf32> to vector<2x32xf32>
    %252 = vector.extract_strided_slice %247 {offsets = [0, 96], sizes = [2, 32], strides = [1, 1]} : vector<2x128xf32> to vector<2x32xf32>
    %253 = arith.mulf %250, %237 : vector<2x32xf32>
    %254 = arith.mulf %249, %251 : vector<2x32xf32>
    %255 = arith.addf %253, %254 : vector<2x32xf32>
    %256 = math.tanh %255 : vector<2x32xf32>
    %257 = arith.mulf %252, %256 : vector<2x32xf32>
    %258 = tpu.concatenate %203, %221, %239, %257 in 0 : vector<2x32xf32>, vector<2x32xf32>, vector<2x32xf32>, vector<2x32xf32> -> vector<8x32xf32>
    %259 = arith.index_cast %183 : i32 to index
    %c0_55 = arith.constant 0 : index
    %260 = vector.load %arg5[%259, %c0_55] : memref<16x32xf32, #tpu.memory_space<vmem>>, vector<8x32xf32>
    tpu.vector_store %arg5[%259, %c0_55], %258 {strides = array<i32>} : memref<16x32xf32, #tpu.memory_space<vmem>>, vector<8x32xf32>,
    %c1_i32_56 = arith.constant 1 : i32
    %c8_i32_57 = arith.constant 8 : i32
    %261 = arith.muli %c1_i32_56, %c8_i32_57 : i32
    %262 = tpu.assume_multiple %261, 8 : i32
    %263 = arith.index_cast %262 : i32 to index
    %c0_58 = arith.constant 0 : index
    %264 = vector.load %arg6[%263, %c0_58] : memref<16x128xf32, #tpu.memory_space<vmem>>, vector<8x128xf32>
    %265 = vector.extract_strided_slice %264 {offsets = [0, 0], sizes = [2, 128], strides = [1, 1]} : vector<8x128xf32> to vector<2x128xf32>
    %cst_59 = arith.constant dense<0.000000e+00> : vector<2x128xf32>
    %266 = tpu.matmul %257, %180, %cst_59 {dimension_numbers = #tpu.dot_dimension_numbers<[1], [0], [0], [1], [0, 0, 1, 1], [], []>} : vector<2x32xf32>, vector<32x128xf32>, vector<2x128xf32> -> vector<2x128xf32>
    %267 = arith.addf %265, %266 : vector<2x128xf32>
    %268 = arith.negf %267 : vector<2x128xf32>
    %269 = math.exp %268 : vector<2x128xf32>
    %cst_60 = arith.constant 1.000000e+00 : f32
    %270 = vector.broadcast %cst_60 : f32 to vector<2x128xf32>
    %271 = arith.addf %270, %269 : vector<2x128xf32>
    %272 = arith.divf %270, %271 : vector<2x128xf32>
    %273 = math.tanh %267 : vector<2x128xf32>
    %274 = vector.extract_strided_slice %272 {offsets = [0, 0], sizes = [2, 32], strides = [1, 1]} : vector<2x128xf32> to vector<2x32xf32>
    %275 = vector.extract_strided_slice %272 {offsets = [0, 32], sizes = [2, 32], strides = [1, 1]} : vector<2x128xf32> to vector<2x32xf32>
    %276 = vector.extract_strided_slice %273 {offsets = [0, 64], sizes = [2, 32], strides = [1, 1]} : vector<2x128xf32> to vector<2x32xf32>
    %277 = vector.extract_strided_slice %272 {offsets = [0, 96], sizes = [2, 32], strides = [1, 1]} : vector<2x128xf32> to vector<2x32xf32>
    %278 = arith.mulf %275, %255 : vector<2x32xf32>
    %279 = arith.mulf %274, %276 : vector<2x32xf32>
    %280 = arith.addf %278, %279 : vector<2x32xf32>
    %281 = math.tanh %280 : vector<2x32xf32>
    %282 = arith.mulf %277, %281 : vector<2x32xf32>
    %283 = vector.extract_strided_slice %264 {offsets = [2, 0], sizes = [2, 128], strides = [1, 1]} : vector<8x128xf32> to vector<2x128xf32>
    %cst_61 = arith.constant dense<0.000000e+00> : vector<2x128xf32>
    %284 = tpu.matmul %282, %180, %cst_61 {dimension_numbers = #tpu.dot_dimension_numbers<[1], [0], [0], [1], [0, 0, 1, 1], [], []>} : vector<2x32xf32>, vector<32x128xf32>, vector<2x128xf32> -> vector<2x128xf32>
    %285 = arith.addf %283, %284 : vector<2x128xf32>
    %286 = arith.negf %285 : vector<2x128xf32>
    %287 = math.exp %286 : vector<2x128xf32>
    %cst_62 = arith.constant 1.000000e+00 : f32
    %288 = vector.broadcast %cst_62 : f32 to vector<2x128xf32>
    %289 = arith.addf %288, %287 : vector<2x128xf32>
    %290 = arith.divf %288, %289 : vector<2x128xf32>
    %291 = math.tanh %285 : vector<2x128xf32>
    %292 = vector.extract_strided_slice %290 {offsets = [0, 0], sizes = [2, 32], strides = [1, 1]} : vector<2x128xf32> to vector<2x32xf32>
    %293 = vector.extract_strided_slice %290 {offsets = [0, 32], sizes = [2, 32], strides = [1, 1]} : vector<2x128xf32> to vector<2x32xf32>
    %294 = vector.extract_strided_slice %291 {offsets = [0, 64], sizes = [2, 32], strides = [1, 1]} : vector<2x128xf32> to vector<2x32xf32>
    %295 = vector.extract_strided_slice %290 {offsets = [0, 96], sizes = [2, 32], strides = [1, 1]} : vector<2x128xf32> to vector<2x32xf32>
    %296 = arith.mulf %293, %280 : vector<2x32xf32>
    %297 = arith.mulf %292, %294 : vector<2x32xf32>
    %298 = arith.addf %296, %297 : vector<2x32xf32>
    %299 = math.tanh %298 : vector<2x32xf32>
    %300 = arith.mulf %295, %299 : vector<2x32xf32>
    %301 = vector.extract_strided_slice %264 {offsets = [4, 0], sizes = [2, 128], strides = [1, 1]} : vector<8x128xf32> to vector<2x128xf32>
    %cst_63 = arith.constant dense<0.000000e+00> : vector<2x128xf32>
    %302 = tpu.matmul %300, %180, %cst_63 {dimension_numbers = #tpu.dot_dimension_numbers<[1], [0], [0], [1], [0, 0, 1, 1], [], []>} : vector<2x32xf32>, vector<32x128xf32>, vector<2x128xf32> -> vector<2x128xf32>
    %303 = arith.addf %301, %302 : vector<2x128xf32>
    %304 = arith.negf %303 : vector<2x128xf32>
    %305 = math.exp %304 : vector<2x128xf32>
    %cst_64 = arith.constant 1.000000e+00 : f32
    %306 = vector.broadcast %cst_64 : f32 to vector<2x128xf32>
    %307 = arith.addf %306, %305 : vector<2x128xf32>
    %308 = arith.divf %306, %307 : vector<2x128xf32>
    %309 = math.tanh %303 : vector<2x128xf32>
    %310 = vector.extract_strided_slice %308 {offsets = [0, 0], sizes = [2, 32], strides = [1, 1]} : vector<2x128xf32> to vector<2x32xf32>
    %311 = vector.extract_strided_slice %308 {offsets = [0, 32], sizes = [2, 32], strides = [1, 1]} : vector<2x128xf32> to vector<2x32xf32>
    %312 = vector.extract_strided_slice %309 {offsets = [0, 64], sizes = [2, 32], strides = [1, 1]} : vector<2x128xf32> to vector<2x32xf32>
    %313 = vector.extract_strided_slice %308 {offsets = [0, 96], sizes = [2, 32], strides = [1, 1]} : vector<2x128xf32> to vector<2x32xf32>
    %314 = arith.mulf %311, %298 : vector<2x32xf32>
    %315 = arith.mulf %310, %312 : vector<2x32xf32>
    %316 = arith.addf %314, %315 : vector<2x32xf32>
    %317 = math.tanh %316 : vector<2x32xf32>
    %318 = arith.mulf %313, %317 : vector<2x32xf32>
    %319 = vector.extract_strided_slice %264 {offsets = [6, 0], sizes = [2, 128], strides = [1, 1]} : vector<8x128xf32> to vector<2x128xf32>
    %cst_65 = arith.constant dense<0.000000e+00> : vector<2x128xf32>
    %320 = tpu.matmul %318, %180, %cst_65 {dimension_numbers = #tpu.dot_dimension_numbers<[1], [0], [0], [1], [0, 0, 1, 1], [], []>} : vector<2x32xf32>, vector<32x128xf32>, vector<2x128xf32> -> vector<2x128xf32>
    %321 = arith.addf %319, %320 : vector<2x128xf32>
    %322 = arith.negf %321 : vector<2x128xf32>
    %323 = math.exp %322 : vector<2x128xf32>
    %cst_66 = arith.constant 1.000000e+00 : f32
    %324 = vector.broadcast %cst_66 : f32 to vector<2x128xf32>
    %325 = arith.addf %324, %323 : vector<2x128xf32>
    %326 = arith.divf %324, %325 : vector<2x128xf32>
    %327 = math.tanh %321 : vector<2x128xf32>
    %328 = vector.extract_strided_slice %326 {offsets = [0, 0], sizes = [2, 32], strides = [1, 1]} : vector<2x128xf32> to vector<2x32xf32>
    %329 = vector.extract_strided_slice %326 {offsets = [0, 32], sizes = [2, 32], strides = [1, 1]} : vector<2x128xf32> to vector<2x32xf32>
    %330 = vector.extract_strided_slice %327 {offsets = [0, 64], sizes = [2, 32], strides = [1, 1]} : vector<2x128xf32> to vector<2x32xf32>
    %331 = vector.extract_strided_slice %326 {offsets = [0, 96], sizes = [2, 32], strides = [1, 1]} : vector<2x128xf32> to vector<2x32xf32>
    %332 = arith.mulf %329, %316 : vector<2x32xf32>
    %333 = arith.mulf %328, %330 : vector<2x32xf32>
    %334 = arith.addf %332, %333 : vector<2x32xf32>
    %335 = math.tanh %334 : vector<2x32xf32>
    %336 = arith.mulf %331, %335 : vector<2x32xf32>
    %337 = tpu.concatenate %282, %300, %318, %336 in 0 : vector<2x32xf32>, vector<2x32xf32>, vector<2x32xf32>, vector<2x32xf32> -> vector<8x32xf32>
    %338 = arith.index_cast %262 : i32 to index
    %c0_67 = arith.constant 0 : index
    %339 = vector.load %arg5[%338, %c0_67] : memref<16x32xf32, #tpu.memory_space<vmem>>, vector<8x32xf32>
    tpu.vector_store %arg5[%338, %c0_67], %337 {strides = array<i32>} : memref<16x32xf32, #tpu.memory_space<vmem>>, vector<8x32xf32>,
    %c2_i32_68 = arith.constant 2 : i32
    return
  }
}

</mosaic_0001>

<llo_original>
// kernel: _lstm4_forward.1
$region0: #{_lstm4_forward.1}
  #allocation0 [shape = 'u32[]', space=smem, size = 0x4, offset = 0x4, fixed_abs, tag = 'smem constant byte address 0x4 - core index']
  #allocation1 [shape = 'u32[144,128]{1,0:T(1,128)}', space=vmem, size = 0x12000, scoped, tag = 'internal scratch']
  #allocation2 [shape = 'f32[16,128]{1,0:T(8,128)}', space=vmem, size = 0x2000, scoped, tag = 'scratch operand']
  %s0 = inlined_call_operand.vmem [shape: f32[16,16], index: 0, kind: input, shape index: {}]
  %s1 = inlined_call_operand.hbm [shape: f32[16,128], index: 1, kind: input, shape index: {}]
  %s2 = inlined_call_operand.vmem [shape: f32[1,32,128], index: 2, kind: input, shape index: {}]
  %s3 = inlined_call_operand.hbm [shape: f32[2,32,128], index: 3, kind: input, shape index: {}]
  %s4 = inlined_call_operand.vmem [shape: f32[2,1,128], index: 4, kind: input, shape index: {}]
  %s5 = inlined_call_operand.vmem [shape: f32[16,32], index: 5, kind: output, shape index: {}]
  %s6 = sld [smem:[#allocation0]]
  $region38: #{_lstm4_forward.1} parent=0
    _
  %s8 = ssub.s32 1, %s6
  %s9 = scalar_select 0, %s8, %s6
  $region1: #{_lstm4_forward.1} parent=0
    #allocation3 [shape = 'u8[8192]{0}', space=vmem, size = 0x2000, scoped, tag = 'input window, operand 1, single buffered']
    #allocation4 [shape = 's32[1]{0}', space=sflag, size = 0x4, scoped, tag = 'scoped memory for _lstm4_forward.1']
    #allocation5 [shape = 'u8[32768]{0}', space=vmem, size = 0x8000, scoped, tag = 'input window, operand 3, single buffered']
    #allocation6 [shape = 's32[1]{0}', space=sflag, size = 0x4, scoped, tag = 'scoped memory for _lstm4_forward.1']
    %10 = vsyncpa [#allocation4], 0
    %11 = vsyncpa [#allocation6], 0
    // Predicated region
    $region2: #{_lstm4_forward.1} parent=1 // pred_check
      _
    $region3: #{_lstm4_forward.1} parent=1 // pred_check_branch
      %13 = sbr.rel (0) target = $region5
    $region4: #{_lstm4_forward.1} parent=1 // pred_region
      _
    $region5: #{_lstm4_forward.1} parent=1 // pred_fallthru
      _
    // Predicated region
    $region6: #{_lstm4_forward.1} parent=1 // pred_check
      _
    $region7: #{_lstm4_forward.1} parent=1 // pred_check_branch
      %15 = sbr.rel (0) target = $region9
    $region8: #{_lstm4_forward.1} parent=1 // pred_region
      %s17 = ssub.s32 256, 256
      %18 = vsyncadd [#allocation4], %s17
      %s19 = sshll.u32 [#allocation3], 4
      %s20 = int_to_ptr.vmem [resolvable:$true] %s19
      %25 = dma.hbm_to_vmem [thread:$0]  %s1, 256, %s20, [#allocation4], 128, 128, 8
    $region9: #{_lstm4_forward.1} parent=1 // pred_fallthru
      _
    // Predicated region
    $region10: #{_lstm4_forward.1} parent=1 // pred_check
      _
    $region11: #{_lstm4_forward.1} parent=1 // pred_check_branch
      %27 = sbr.rel (0) target = $region13
    $region12: #{_lstm4_forward.1} parent=1 // pred_region
      _
    $region13: #{_lstm4_forward.1} parent=1 // pred_fallthru
      _
    // Predicated region
    $region14: #{_lstm4_forward.1} parent=1 // pred_check
      _
    $region15: #{_lstm4_forward.1} parent=1 // pred_check_branch
      %29 = sbr.rel (0) target = $region17
    $region16: #{_lstm4_forward.1} parent=1 // pred_region
      %s31 = ssub.s32 1024, 1024
      %32 = vsyncadd [#allocation6], %s31
      %s33 = sshll.u32 [#allocation5], 4
      %s34 = int_to_ptr.vmem [resolvable:$true] %s33
      %39 = dma.hbm_to_vmem [thread:$0]  %s3, 1024, %s34, [#allocation6], 128, 128, 8
    $region17: #{_lstm4_forward.1} parent=1 // pred_fallthru
      _
    // Predicated region
    $region18: #{_lstm4_forward.1} parent=1 // pred_check
      _
    $region19: #{_lstm4_forward.1} parent=1 // pred_check_branch
      %41 = sbr.rel (0) target = $region21
    $region20: #{_lstm4_forward.1} parent=1 // pred_region
      _
    $region21: #{_lstm4_forward.1} parent=1 // pred_fallthru
      _
    // Predicated region
    $region22: #{_lstm4_forward.1} parent=1 // pred_check
      _
    $region23: #{_lstm4_forward.1} parent=1 // pred_check_branch
      %43 = sbr.rel (0) target = $region25
    $region24: #{_lstm4_forward.1} parent=1 // pred_region
      %44 = dma.done [#allocation4], 256
    $region25: #{_lstm4_forward.1} parent=1 // pred_fallthru
      _
    // Predicated region
    $region26: #{_lstm4_forward.1} parent=1 // pred_check
      _
    $region27: #{_lstm4_forward.1} parent=1 // pred_check_branch
      %46 = sbr.rel (0) target = $region29
    $region28: #{_lstm4_forward.1} parent=1 // pred_region
      %47 = dma.done [#allocation6], 1024
    $region29: #{_lstm4_forward.1} parent=1 // pred_fallthru
      _
    %v48 = vld [vmem:[%s0] sm:$0xff]
    %v49 = vld [vmem:[%s0 + $0x8] sm:$0xff]
    %v50 = vld [vmem:[#allocation3] sm:$0xff]
    %v51 = vld [vmem:[#allocation3 + $0x8] sm:$0xff]
    %v52 = vld [vmem:[%s4] sm:$0x1]
    %v54 = vlaneseq
    %v55 = vshrl.u32 %v54, 7
    %v56 = vsub.s32 0, %v55
    %v57 = vrot.slane %v52, %v56
    %vm59 = vcmask 130048
    %v61 = vsel %vm59, %v48, 0
    %v64 = vsel %vm59, %v49, 0
    %66 = vmatprep.subr.mxu0 0.0
    %67 = vmatpush1.msra.mxu0 %v50
    %68 = vmatprep.subr.mxu0 0.0
    %69 = vmatpush1.msra.mxu0 %v51
    %70 = vmatprep.subr.mxu0 0.0
    %71 = vmatpush1.msra.mxu0 0.0
    %72 = vmatprep.subr.mxu0 0.0
    %73 = vmatpush1.msra.mxu0 0.0
    %74 = vmatprep.subr.mxu0 0.0
    %75 = vmatpush1.msra.mxu0 0.0
    %76 = vmatprep.subr.mxu0 0.0
    %77 = vmatpush1.msra.mxu0 0.0
    %78 = vmatprep.subr.mxu0 0.0
    %79 = vmatpush1.msra.mxu0 0.0
    %80 = vmatprep.subr.mxu0 0.0
    %81 = vmatpush1.msra.mxu0 0.0
    %82 = vmatprep.subr.mxu0 0.0
    %83 = vmatpush1.msra.mxu0 0.0
    %84 = vmatprep.subr.mxu0 0.0
    %85 = vmatpush1.msra.mxu0 0.0
    %86 = vmatprep.subr.mxu0 0.0
    %87 = vmatpush1.msra.mxu0 0.0
    %88 = vmatprep.subr.mxu0 0.0
    %89 = vmatpush1.msra.mxu0 0.0
    %90 = vmatprep.subr.mxu0 0.0
    %91 = vmatpush1.msra.mxu0 0.0
    %92 = vmatprep.subr.mxu0 0.0
    %93 = vmatpush1.msra.mxu0 0.0
    %94 = vmatprep.subr.mxu0 0.0
    %95 = vmatpush1.msra.mxu0 0.0
    %96 = vmatprep.subr.mxu0 0.0
    %97 = vmatpush1.msra.mxu0 0.0
    %98 = vmatprep.subr.mxu0 0.0
    %99 = vmatpush1.msra.mxu0 0.0
    %100 = vmatprep.subr.mxu0 0.0
    %101 = vmatpush1.msra.mxu0 0.0
    %102 = vmatprep.subr.mxu0 0.0
    %103 = vmatpush1.msra.mxu0 0.0
    %104 = vmatprep.subr.mxu0 0.0
    %105 = vmatpush1.msra.mxu0 0.0
    %106 = vmatprep.subr.mxu0 0.0
    %107 = vmatpush1.msra.mxu0 0.0
    %108 = vmatprep.subr.mxu0 0.0
    %109 = vmatpush1.msra.mxu0 0.0
    %110 = vmatprep.subr.mxu0 0.0
    %111 = vmatpush1.msra.mxu0 0.0
    %112 = vmatprep.subr.mxu0 0.0
    %113 = vmatpush1.msra.mxu0 0.0
    %114 = vmatprep.subr.mxu0 0.0
    %115 = vmatpush1.msra.mxu0 0.0
    %116 = vmatprep.subr.mxu0 0.0
    %117 = vmatpush1.msra.mxu0 0.0
    %118 = vmatprep.subr.mxu0 0.0
    %119 = vmatpush1.msra.mxu0 0.0
    %120 = vmatprep.subr.mxu0 0.0
    %121 = vmatpush1.msra.mxu0 0.0
    %122 = vmatprep.subr.mxu0 0.0
    %123 = vmatpush1.msra.mxu0 0.0
    %124 = vmatprep.subr.mxu0 0.0
    %125 = vmatpush1.msra.mxu0 0.0
    %126 = vmatprep.subr.mxu0 0.0
    %127 = vmatpush1.msra.mxu0 0.0
    %128 = vmatprep.subr.mxu0 0.0
    %129 = vmatpush1.msra.mxu0 0.0
    %130 = vmatprep.mubr.f32.mxu0 0.0
    %131 = vmatmul.mubr.f32.gmra.mrb[0].mxu0 %v61
    %v132 = vpop.f32.mrb[0].mxu0
    %v133 = vadd.f32 %v57, %v132
    %v134 = vpop.f32.mrb[0].mxu0
    %135 = vmatprep.mubr.f32.mxu0 0.0
    %136 = vmatmul.mubr.f32.gmra.mrb[0].mxu0 %v64
    %v137 = vpop.f32.mrb[0].mxu0
    %v138 = vadd.f32 %v57, %v137
    %v139 = vpop.f32.mrb[0].mxu0
    %140 = vdwg.mxu0
    %141 = vst [vmem:[#allocation2] sm:$0xff] %v133
    %142 = vst [vmem:[#allocation2 + $0x8] sm:$0xff] %v138
    %v143 = vld [vmem:[#allocation5] sm:$0xff]
    %v144 = vld [vmem:[#allocation5 + $0x8] sm:$0xff]
    %v145 = vld [vmem:[#allocation5 + $0x10] sm:$0xff]
    %v146 = vld [vmem:[#allocation5 + $0x18] sm:$0xff]
    %v147 = vld [vmem:[%s2] sm:$0xff]
    %v148 = vld [vmem:[%s2 + $0x8] sm:$0xff]
    %v149 = vld [vmem:[%s2 + $0x10] sm:$0xff]
    %v150 = vld [vmem:[%s2 + $0x18] sm:$0xff]
    %s151 = scalar_lea.vmem %s4, 1
    %v152 = vld [vmem:[%s151] sm:$0x1]
    %v153 = vld [vmem:[#allocation2] sm:$0xff]
    %vm154 = vcmask 261120
    %v156 = vsel %vm154, 0.0, 0
    %158 = vmatprep.subr.mxu0 0.0
    %159 = vmatpush1.msra.mxu0 %v143
    %160 = vmatprep.subr.mxu0 0.0
    %161 = vmatpush1.msra.mxu0 %v144
    %162 = vmatprep.subr.mxu0 0.0
    %163 = vmatpush1.msra.mxu0 %v145
    %164 = vmatprep.subr.mxu0 0.0
    %165 = vmatpush1.msra.mxu0 %v146
    %166 = vmatprep.subr.mxu0 0.0
    %167 = vmatpush1.msra.mxu0 0.0
    %168 = vmatprep.subr.mxu0 0.0
    %169 = vmatpush1.msra.mxu0 0.0
    %170 = vmatprep.subr.mxu0 0.0
    %171 = vmatpush1.msra.mxu0 0.0
    %172 = vmatprep.subr.mxu0 0.0
    %173 = vmatpush1.msra.mxu0 0.0
    %174 = vmatprep.subr.mxu0 0.0
    %175 = vmatpush1.msra.mxu0 0.0
    %176 = vmatprep.subr.mxu0 0.0
    %177 = vmatpush1.msra.mxu0 0.0
    %178 = vmatprep.subr.mxu0 0.0
    %179 = vmatpush1.msra.mxu0 0.0
    %180 = vmatprep.subr.mxu0 0.0
    %181 = vmatpush1.msra.mxu0 0.0
    %182 = vmatprep.subr.mxu0 0.0
    %183 = vmatpush1.msra.mxu0 0.0
    %184 = vmatprep.subr.mxu0 0.0
    %185 = vmatpush1.msra.mxu0 0.0
    %186 = vmatprep.subr.mxu0 0.0
    %187 = vmatpush1.msra.mxu0 0.0
    %188 = vmatprep.subr.mxu0 0.0
    %189 = vmatpush1.msra.mxu0 0.0
    %190 = vmatprep.subr.mxu0 0.0
    %191 = vmatpush1.msra.mxu0 0.0
    %192 = vmatprep.subr.mxu0 0.0
    %193 = vmatpush1.msra.mxu0 0.0
    %194 = vmatprep.subr.mxu0 0.0
    %195 = vmatpush1.msra.mxu0 0.0
    %196 = vmatprep.subr.mxu0 0.0
    %197 = vmatpush1.msra.mxu0 0.0
    %198 = vmatprep.subr.mxu0 0.0
    %199 = vmatpush1.msra.mxu0 0.0
    %200 = vmatprep.subr.mxu0 0.0
    %201 = vmatpush1.msra.mxu0 0.0
    %202 = vmatprep.subr.mxu0 0.0
    %203 = vmatpush1.msra.mxu0 0.0
    %204 = vmatprep.subr.mxu0 0.0
    %205 = vmatpush1.msra.mxu0 0.0
    %206 = vmatprep.subr.mxu0 0.0
    %207 = vmatpush1.msra.mxu0 0.0
    %208 = vmatprep.subr.mxu0 0.0
    %209 = vmatpush1.msra.mxu0 0.0
    %210 = vmatprep.subr.mxu0 0.0
    %211 = vmatpush1.msra.mxu0 0.0
    %212 = vmatprep.subr.mxu0 0.0
    %213 = vmatpush1.msra.mxu0 0.0
    %214 = vmatprep.subr.mxu0 0.0
    %215 = vmatpush1.msra.mxu0 0.0
    %216 = vmatprep.subr.mxu0 0.0
    %217 = vmatpush1.msra.mxu0 0.0
    %218 = vmatprep.subr.mxu0 0.0
    %219 = vmatpush1.msra.mxu0 0.0
    %220 = vmatprep.subr.mxu0 0.0
    %221 = vmatpush1.msra.mxu0 0.0
    %222 = vmatprep.mubr.f32.mxu0 0.0
    %223 = vmatmul.mubr.f32.gmra.mrb[0].mxu0 %v156
    %v224 = vpop.f32.mrb[0].mxu0
    %v225 = vadd.f32 0.0, %v224
    %v226 = vpop.f32.mrb[0].mxu0
    %227 = vdwg.mxu0
    %v228 = vadd.f32 %v153, %v225
    %v229 = vxor.u32 %v228, 2147483648
    %v230 = vmul.f32 %v229, 1.442695
    %v231 = vpow.pop %v230
    %v232 = vadd.f32 %v231, 1.0
    %v233 = vrcp.pop %v232
    %v234 = vmul.f32 1.0, %v233
    %v235 = vtanh.pop %v228
    %v236 = vmul.f32 %v234, 0.0
    %238 = vrot.lane.b32.xlu0 %v235, 64
    %v239 = vpop.permute.xlu0 %238
    %v241 = vmul.f32 %v234, %v239
    %243 = vrot.lane.b32.xlu0 %v241, 32
    %v244 = vpop.permute.xlu0 %243
    %v246 = vadd.f32 %v236, %v244
    %v247 = vtanh.pop %v246
    %249 = vrot.lane.b32.xlu0 %v247, 64
    %v250 = vpop.permute.xlu0 %249
    %v252 = vmul.f32 %v234, %v250
    %254 = vrot.lane.b32.xlu0 %v252, 32
    %v255 = vpop.permute.xlu0 %254
    %v256 = vsel %vm154, %v255, 0
    %258 = vmatprep.subr.mxu0 0.0
    %259 = vmatpush1.msra.mxu0 %v143
    %260 = vmatprep.subr.mxu0 0.0
    %261 = vmatpush1.msra.mxu0 %v144
    %262 = vmatprep.subr.mxu0 0.0
    %263 = vmatpush1.msra.mxu0 %v145
    %264 = vmatprep.subr.mxu0 0.0
    %265 = vmatpush1.msra.mxu0 %v146
    %266 = vmatprep.subr.mxu0 0.0
    %267 = vmatpush1.msra.mxu0 0.0
    %268 = vmatprep.subr.mxu0 0.0
    %269 = vmatpush1.msra.mxu0 0.0
    %270 = vmatprep.subr.mxu0 0.0
    %271 = vmatpush1.msra.mxu0 0.0
    %272 = vmatprep.subr.mxu0 0.0
    %273 = vmatpush1.msra.mxu0 0.0
    %274 = vmatprep.subr.mxu0 0.0
    %275 = vmatpush1.msra.mxu0 0.0
    %276 = vmatprep.subr.mxu0 0.0
    %277 = vmatpush1.msra.mxu0 0.0
    %278 = vmatprep.subr.mxu0 0.0
    %279 = vmatpush1.msra.mxu0 0.0
    %280 = vmatprep.subr.mxu0 0.0
    %281 = vmatpush1.msra.mxu0 0.0
    %282 = vmatprep.subr.mxu0 0.0
    %283 = vmatpush1.msra.mxu0 0.0
    %284 = vmatprep.subr.mxu0 0.0
    %285 = vmatpush1.msra.mxu0 0.0
    %286 = vmatprep.subr.mxu0 0.0
    %287 = vmatpush1.msra.mxu0 0.0
    %288 = vmatprep.subr.mxu0 0.0
    %289 = vmatpush1.msra.mxu0 0.0
    %290 = vmatprep.subr.mxu0 0.0
    %291 = vmatpush1.msra.mxu0 0.0
    %292 = vmatprep.subr.mxu0 0.0
    %293 = vmatpush1.msra.mxu0 0.0
    %294 = vmatprep.subr.mxu0 0.0
    %295 = vmatpush1.msra.mxu0 0.0
    %296 = vmatprep.subr.mxu0 0.0
    %297 = vmatpush1.msra.mxu0 0.0
    %298 = vmatprep.subr.mxu0 0.0
    %299 = vmatpush1.msra.mxu0 0.0
    %300 = vmatprep.subr.mxu0 0.0
    %301 = vmatpush1.msra.mxu0 0.0
    %302 = vmatprep.subr.mxu0 0.0
    %303 = vmatpush1.msra.mxu0 0.0
    %304 = vmatprep.subr.mxu0 0.0
    %305 = vmatpush1.msra.mxu0 0.0
    %306 = vmatprep.subr.mxu0 0.0
    %307 = vmatpush1.msra.mxu0 0.0
    %308 = vmatprep.subr.mxu0 0.0
    %309 = vmatpush1.msra.mxu0 0.0
    %310 = vmatprep.subr.mxu0 0.0
    %311 = vmatpush1.msra.mxu0 0.0
    %312 = vmatprep.subr.mxu0 0.0
    %313 = vmatpush1.msra.mxu0 0.0
    %314 = vmatprep.subr.mxu0 0.0
    %315 = vmatpush1.msra.mxu0 0.0
    %316 = vmatprep.subr.mxu0 0.0
    %317 = vmatpush1.msra.mxu0 0.0
    %318 = vmatprep.subr.mxu0 0.0
    %319 = vmatpush1.msra.mxu0 0.0
    %320 = vmatprep.subr.mxu0 0.0
    %321 = vmatpush1.msra.mxu0 0.0
    %322 = vmatprep.mubr.f32.mxu0 0.0
    %323 = vmatmul.mubr.f32.gmra.mrb[0].mxu0 %v256
    %v324 = vpop.f32.mrb[0].mxu0
    %v325 = vadd.f32 0.0, %v324
    %v326 = vpop.f32.mrb[0].mxu0
    %327 = vdwg.mxu0
    %v329 = vrot.slane %v325, 6
    %v331 = vadd.f32 %v153, %v329
    %v332 = vxor.u32 %v331, 2147483648
    %v333 = vmul.f32 %v332, 1.442695
    %v334 = vpow.pop %v333
    %v335 = vadd.f32 %v334, 1.0
    %v336 = vrcp.pop %v335
    %v337 = vmul.f32 1.0, %v336
    %v338 = vtanh.pop %v331
    %v340 = vrot.slane %v246, 6
    %v342 = vmul.f32 %v337, %v340
    %344 = vrot.lane.b32.xlu0 %v338, 64
    %v345 = vpop.permute.xlu0 %344
    %v347 = vmul.f32 %v337, %v345
    %349 = vrot.lane.b32.xlu0 %v347, 32
    %v350 = vpop.permute.xlu0 %349
    %v352 = vadd.f32 %v342, %v350
    %v353 = vtanh.pop %v352
    %355 = vrot.lane.b32.xlu0 %v353, 64
    %v356 = vpop.permute.xlu0 %355
    %v358 = vmul.f32 %v337, %v356
    %v360 = vrot.slane %v358, 2
    %361 = vrot.lane.b32.xlu0 %v360, 32
    %v362 = vpop.permute.xlu0 %361
    %v363 = vsel %vm154, %v362, 0
    %365 = vmatprep.subr.mxu0 0.0
    %366 = vmatpush1.msra.mxu0 %v143
    %367 = vmatprep.subr.mxu0 0.0
    %368 = vmatpush1.msra.mxu0 %v144
    %369 = vmatprep.subr.mxu0 0.0
    %370 = vmatpush1.msra.mxu0 %v145
    %371 = vmatprep.subr.mxu0 0.0
    %372 = vmatpush1.msra.mxu0 %v146
    %373 = vmatprep.subr.mxu0 0.0
    %374 = vmatpush1.msra.mxu0 0.0
    %375 = vmatprep.subr.mxu0 0.0
    %376 = vmatpush1.msra.mxu0 0.0
    %377 = vmatprep.subr.mxu0 0.0
    %378 = vmatpush1.msra.mxu0 0.0
    %379 = vmatprep.subr.mxu0 0.0
    %380 = vmatpush1.msra.mxu0 0.0
    %381 = vmatprep.subr.mxu0 0.0
    %382 = vmatpush1.msra.mxu0 0.0
    %383 = vmatprep.subr.mxu0 0.0
    %384 = vmatpush1.msra.mxu0 0.0
    %385 = vmatprep.subr.mxu0 0.0
    %386 = vmatpush1.msra.mxu0 0.0
    %387 = vmatprep.subr.mxu0 0.0
    %388 = vmatpush1.msra.mxu0 0.0
    %389 = vmatprep.subr.mxu0 0.0
    %390 = vmatpush1.msra.mxu0 0.0
    %391 = vmatprep.subr.mxu0 0.0
    %392 = vmatpush1.msra.mxu0 0.0
    %393 = vmatprep.subr.mxu0 0.0
    %394 = vmatpush1.msra.mxu0 0.0
    %395 = vmatprep.subr.mxu0 0.0
    %396 = vmatpush1.msra.mxu0 0.0
    %397 = vmatprep.subr.mxu0 0.0
    %398 = vmatpush1.msra.mxu0 0.0
    %399 = vmatprep.subr.mxu0 0.0
    %400 = vmatpush1.msra.mxu0 0.0
    %401 = vmatprep.subr.mxu0 0.0
    %402 = vmatpush1.msra.mxu0 0.0
    %403 = vmatprep.subr.mxu0 0.0
    %404 = vmatpush1.msra.mxu0 0.0
    %405 = vmatprep.subr.mxu0 0.0
    %406 = vmatpush1.msra.mxu0 0.0
    %407 = vmatprep.subr.mxu0 0.0
    %408 = vmatpush1.msra.mxu0 0.0
    %409 = vmatprep.subr.mxu0 0.0
    %410 = vmatpush1.msra.mxu0 0.0
    %411 = vmatprep.subr.mxu0 0.0
    %412 = vmatpush1.msra.mxu0 0.0
    %413 = vmatprep.subr.mxu0 0.0
    %414 = vmatpush1.msra.mxu0 0.0
    %415 = vmatprep.subr.mxu0 0.0
    %416 = vmatpush1.msra.mxu0 0.0
    %417 = vmatprep.subr.mxu0 0.0
    %418 = vmatpush1.msra.mxu0 0.0
    %419 = vmatprep.subr.mxu0 0.0
    %420 = vmatpush1.msra.mxu0 0.0
    %421 = vmatprep.subr.mxu0 0.0
    %422 = vmatpush1.msra.mxu0 0.0
    %423 = vmatprep.subr.mxu0 0.0
    %424 = vmatpush1.msra.mxu0 0.0
    %425 = vmatprep.subr.mxu0 0.0
    %426 = vmatpush1.msra.mxu0 0.0
    %427 = vmatprep.subr.mxu0 0.0
    %428 = vmatpush1.msra.mxu0 0.0
    %429 = vmatprep.mubr.f32.mxu0 0.0
    %430 = vmatmul.mubr.f32.gmra.mrb[0].mxu0 %v363
    %v431 = vpop.f32.mrb[0].mxu0
    %v432 = vadd.f32 0.0, %v431
    %v433 = vpop.f32.mrb[0].mxu0
    %434 = vdwg.mxu0
    %v436 = vrot.slane %v432, 4
    %v438 = vadd.f32 %v153, %v436
    %v439 = vxor.u32 %v438, 2147483648
    %v440 = vmul.f32 %v439, 1.442695
    %v441 = vpow.pop %v440
    %v442 = vadd.f32 %v441, 1.0
    %v443 = vrcp.pop %v442
    %v444 = vmul.f32 1.0, %v443
    %v445 = vtanh.pop %v438
    %v447 = vrot.slane %v352, 6
    %v449 = vmul.f32 %v444, %v447
    %451 = vrot.lane.b32.xlu0 %v445, 64
    %v452 = vpop.permute.xlu0 %451
    %v454 = vmul.f32 %v444, %v452
    %456 = vrot.lane.b32.xlu0 %v454, 32
    %v457 = vpop.permute.xlu0 %456
    %v459 = vadd.f32 %v449, %v457
    %v460 = vtanh.pop %v459
    %462 = vrot.lane.b32.xlu0 %v460, 64
    %v463 = vpop.permute.xlu0 %462
    %v465 = vmul.f32 %v444, %v463
    %v467 = vrot.slane %v465, 4
    %468 = vrot.lane.b32.xlu0 %v467, 32
    %v469 = vpop.permute.xlu0 %468
    %v470 = vsel %vm154, %v469, 0
    %472 = vmatprep.subr.mxu0 0.0
    %473 = vmatpush1.msra.mxu0 %v143
    %474 = vmatprep.subr.mxu0 0.0
    %475 = vmatpush1.msra.mxu0 %v144
    %476 = vmatprep.subr.mxu0 0.0
    %477 = vmatpush1.msra.mxu0 %v145
    %478 = vmatprep.subr.mxu0 0.0
    %479 = vmatpush1.msra.mxu0 %v146
    %480 = vmatprep.subr.mxu0 0.0
    %481 = vmatpush1.msra.mxu0 0.0
    %482 = vmatprep.subr.mxu0 0.0
    %483 = vmatpush1.msra.mxu0 0.0
    %484 = vmatprep.subr.mxu0 0.0
    %485 = vmatpush1.msra.mxu0 0.0
    %486 = vmatprep.subr.mxu0 0.0
    %487 = vmatpush1.msra.mxu0 0.0
    %488 = vmatprep.subr.mxu0 0.0
    %489 = vmatpush1.msra.mxu0 0.0
    %490 = vmatprep.subr.mxu0 0.0
    %491 = vmatpush1.msra.mxu0 0.0
    %492 = vmatprep.subr.mxu0 0.0
    %493 = vmatpush1.msra.mxu0 0.0
    %494 = vmatprep.subr.mxu0 0.0
    %495 = vmatpush1.msra.mxu0 0.0
    %496 = vmatprep.subr.mxu0 0.0
    %497 = vmatpush1.msra.mxu0 0.0
    %498 = vmatprep.subr.mxu0 0.0
    %499 = vmatpush1.msra.mxu0 0.0
    %500 = vmatprep.subr.mxu0 0.0
    %501 = vmatpush1.msra.mxu0 0.0
    %502 = vmatprep.subr.mxu0 0.0
    %503 = vmatpush1.msra.mxu0 0.0
    %504 = vmatprep.subr.mxu0 0.0
    %505 = vmatpush1.msra.mxu0 0.0
    %506 = vmatprep.subr.mxu0 0.0
    %507 = vmatpush1.msra.mxu0 0.0
    %508 = vmatprep.subr.mxu0 0.0
    %509 = vmatpush1.msra.mxu0 0.0
    %510 = vmatprep.subr.mxu0 0.0
    %511 = vmatpush1.msra.mxu0 0.0
    %512 = vmatprep.subr.mxu0 0.0
    %513 = vmatpush1.msra.mxu0 0.0
    %514 = vmatprep.subr.mxu0 0.0
    %515 = vmatpush1.msra.mxu0 0.0
    %516 = vmatprep.subr.mxu0 0.0
    %517 = vmatpush1.msra.mxu0 0.0
    %518 = vmatprep.subr.mxu0 0.0
    %519 = vmatpush1.msra.mxu0 0.0
    %520 = vmatprep.subr.mxu0 0.0
    %521 = vmatpush1.msra.mxu0 0.0
    %522 = vmatprep.subr.mxu0 0.0
    %523 = vmatpush1.msra.mxu0 0.0
    %524 = vmatprep.subr.mxu0 0.0
    %525 = vmatpush1.msra.mxu0 0.0
    %526 = vmatprep.subr.mxu0 0.0
    %527 = vmatpush1.msra.mxu0 0.0
    %528 = vmatprep.subr.mxu0 0.0
    %529 = vmatpush1.msra.mxu0 0.0
    %530 = vmatprep.subr.mxu0 0.0
    %531 = vmatpush1.msra.mxu0 0.0
    %532 = vmatprep.subr.mxu0 0.0
    %533 = vmatpush1.msra.mxu0 0.0
    %534 = vmatprep.subr.mxu0 0.0
    %535 = vmatpush1.msra.mxu0 0.0
    %536 = vmatprep.mubr.f32.mxu0 0.0
    %537 = vmatmul.mubr.f32.gmra.mrb[0].mxu0 %v470
    %v538 = vpop.f32.mrb[0].mxu0
    %v539 = vadd.f32 0.0, %v538
    %v540 = vpop.f32.mrb[0].mxu0
    %541 = vdwg.mxu0
    %v543 = vrot.slane %v539, 2
    %v545 = vadd.f32 %v153, %v543
    %v546 = vxor.u32 %v545, 2147483648
    %v547 = vmul.f32 %v546, 1.442695
    %v548 = vpow.pop %v547
    %v549 = vadd.f32 %v548, 1.0
    %v550 = vrcp.pop %v549
    %v551 = vmul.f32 1.0, %v550
    %v552 = vtanh.pop %v545
    %v554 = vrot.slane %v459, 6
    %v556 = vmul.f32 %v551, %v554
    %558 = vrot.lane.b32.xlu0 %v552, 64
    %v559 = vpop.permute.xlu0 %558
    %v561 = vmul.f32 %v551, %v559
    %563 = vrot.lane.b32.xlu0 %v561, 32
    %v564 = vpop.permute.xlu0 %563
    %v566 = vadd.f32 %v556, %v564
    %v567 = vtanh.pop %v566
    %569 = vrot.lane.b32.xlu0 %v567, 64
    %v570 = vpop.permute.xlu0 %569
    %v572 = vmul.f32 %v551, %v570
    %vm573 = vcmask 1041408
    %v574 = vsel %vm573, %v252, %v358
    %vm575 = vcmask 1043456
    %v576 = vsel %vm575, %v574, %v465
    %vm577 = vcmask 1045504
    %v578 = vsel %vm577, %v576, %v572
    %v580 = vlaneseq
    %v581 = vshrl.u32 %v580, 7
    %v582 = vsub.s32 0, %v581
    %v583 = vrot.slane %v152, %v582
    %586 = vrot.lane.b32.xlu0 %v578, 32
    %v587 = vpop.permute.xlu0 %586
    %v588 = vsel %vm154, %v587, 0
    %590 = vmatprep.subr.mxu0 0.0
    %591 = vmatpush1.msra.mxu0 %v147
    %592 = vmatprep.subr.mxu0 0.0
    %593 = vmatpush1.msra.mxu0 %v148
    %594 = vmatprep.subr.mxu0 0.0
    %595 = vmatpush1.msra.mxu0 %v149
    %596 = vmatprep.subr.mxu0 0.0
    %597 = vmatpush1.msra.mxu0 %v150
    %598 = vmatprep.subr.mxu0 0.0
    %599 = vmatpush1.msra.mxu0 0.0
    %600 = vmatprep.subr.mxu0 0.0
    %601 = vmatpush1.msra.mxu0 0.0
    %602 = vmatprep.subr.mxu0 0.0
    %603 = vmatpush1.msra.mxu0 0.0
    %604 = vmatprep.subr.mxu0 0.0
    %605 = vmatpush1.msra.mxu0 0.0
    %606 = vmatprep.subr.mxu0 0.0
    %607 = vmatpush1.msra.mxu0 0.0
    %608 = vmatprep.subr.mxu0 0.0
    %609 = vmatpush1.msra.mxu0 0.0
    %610 = vmatprep.subr.mxu0 0.0
    %611 = vmatpush1.msra.mxu0 0.0
    %612 = vmatprep.subr.mxu0 0.0
    %613 = vmatpush1.msra.mxu0 0.0
    %614 = vmatprep.subr.mxu0 0.0
    %615 = vmatpush1.msra.mxu0 0.0
    %616 = vmatprep.subr.mxu0 0.0
    %617 = vmatpush1.msra.mxu0 0.0
    %618 = vmatprep.subr.mxu0 0.0
    %619 = vmatpush1.msra.mxu0 0.0
    %620 = vmatprep.subr.mxu0 0.0
    %621 = vmatpush1.msra.mxu0 0.0
    %622 = vmatprep.subr.mxu0 0.0
    %623 = vmatpush1.msra.mxu0 0.0
    %624 = vmatprep.subr.mxu0 0.0
    %625 = vmatpush1.msra.mxu0 0.0
    %626 = vmatprep.subr.mxu0 0.0
    %627 = vmatpush1.msra.mxu0 0.0
    %628 = vmatprep.subr.mxu0 0.0
    %629 = vmatpush1.msra.mxu0 0.0
    %630 = vmatprep.subr.mxu0 0.0
    %631 = vmatpush1.msra.mxu0 0.0
    %632 = vmatprep.subr.mxu0 0.0
    %633 = vmatpush1.msra.mxu0 0.0
    %634 = vmatprep.subr.mxu0 0.0
    %635 = vmatpush1.msra.mxu0 0.0
    %636 = vmatprep.subr.mxu0 0.0
    %637 = vmatpush1.msra.mxu0 0.0
    %638 = vmatprep.subr.mxu0 0.0
    %639 = vmatpush1.msra.mxu0 0.0
    %640 = vmatprep.subr.mxu0 0.0
    %641 = vmatpush1.msra.mxu0 0.0
    %642 = vmatprep.subr.mxu0 0.0
    %643 = vmatpush1.msra.mxu0 0.0
    %644 = vmatprep.subr.mxu0 0.0
    %645 = vmatpush1.msra.mxu0 0.0
    %646 = vmatprep.subr.mxu0 0.0
    %647 = vmatpush1.msra.mxu0 0.0
    %648 = vmatprep.subr.mxu0 0.0
    %649 = vmatpush1.msra.mxu0 0.0
    %650 = vmatprep.subr.mxu0 0.0
    %651 = vmatpush1.msra.mxu0 0.0
    %652 = vmatprep.subr.mxu0 0.0
    %653 = vmatpush1.msra.mxu0 0.0
    %654 = vmatprep.mubr.f32.mxu0 0.0
    %655 = vmatmul.mubr.f32.gmra.mrb[0].mxu0 %v588
    %v656 = vpop.f32.mrb[0].mxu0
    %v657 = vadd.f32 %v583, %v656
    %v658 = vpop.f32.mrb[0].mxu0
    %659 = vdwg.mxu0
    %660 = vst [vmem:[#allocation2] sm:$0xff] %v657
    %s661 = scalar_lea.vmem [#allocation2], 8
    %v662 = vld [vmem:[%s661] sm:$0xff]
    %v664 = vrot.slane %v572, 6
    %665 = vrot.lane.b32.xlu0 %v664, 32
    %v666 = vpop.permute.xlu0 %665
    %v667 = vsel %vm154, %v666, 0
    %669 = vmatprep.subr.mxu0 0.0
    %670 = vmatpush1.msra.mxu0 %v143
    %671 = vmatprep.subr.mxu0 0.0
    %672 = vmatpush1.msra.mxu0 %v144
    %673 = vmatprep.subr.mxu0 0.0
    %674 = vmatpush1.msra.mxu0 %v145
    %675 = vmatprep.subr.mxu0 0.0
    %676 = vmatpush1.msra.mxu0 %v146
    %677 = vmatprep.subr.mxu0 0.0
    %678 = vmatpush1.msra.mxu0 0.0
    %679 = vmatprep.subr.mxu0 0.0
    %680 = vmatpush1.msra.mxu0 0.0
    %681 = vmatprep.subr.mxu0 0.0
    %682 = vmatpush1.msra.mxu0 0.0
    %683 = vmatprep.subr.mxu0 0.0
    %684 = vmatpush1.msra.mxu0 0.0
    %685 = vmatprep.subr.mxu0 0.0
    %686 = vmatpush1.msra.mxu0 0.0
    %687 = vmatprep.subr.mxu0 0.0
    %688 = vmatpush1.msra.mxu0 0.0
    %689 = vmatprep.subr.mxu0 0.0
    %690 = vmatpush1.msra.mxu0 0.0
    %691 = vmatprep.subr.mxu0 0.0
    %692 = vmatpush1.msra.mxu0 0.0
    %693 = vmatprep.subr.mxu0 0.0
    %694 = vmatpush1.msra.mxu0 0.0
    %695 = vmatprep.subr.mxu0 0.0
    %696 = vmatpush1.msra.mxu0 0.0
    %697 = vmatprep.subr.mxu0 0.0
    %698 = vmatpush1.msra.mxu0 0.0
    %699 = vmatprep.subr.mxu0 0.0
    %700 = vmatpush1.msra.mxu0 0.0
    %701 = vmatprep.subr.mxu0 0.0
    %702 = vmatpush1.msra.mxu0 0.0
    %703 = vmatprep.subr.mxu0 0.0
    %704 = vmatpush1.msra.mxu0 0.0
    %705 = vmatprep.subr.mxu0 0.0
    %706 = vmatpush1.msra.mxu0 0.0
    %707 = vmatprep.subr.mxu0 0.0
    %708 = vmatpush1.msra.mxu0 0.0
    %709 = vmatprep.subr.mxu0 0.0
    %710 = vmatpush1.msra.mxu0 0.0
    %711 = vmatprep.subr.mxu0 0.0
    %712 = vmatpush1.msra.mxu0 0.0
    %713 = vmatprep.subr.mxu0 0.0
    %714 = vmatpush1.msra.mxu0 0.0
    %715 = vmatprep.subr.mxu0 0.0
    %716 = vmatpush1.msra.mxu0 0.0
    %717 = vmatprep.subr.mxu0 0.0
    %718 = vmatpush1.msra.mxu0 0.0
    %719 = vmatprep.subr.mxu0 0.0
    %720 = vmatpush1.msra.mxu0 0.0
    %721 = vmatprep.subr.mxu0 0.0
    %722 = vmatpush1.msra.mxu0 0.0
    %723 = vmatprep.subr.mxu0 0.0
    %724 = vmatpush1.msra.mxu0 0.0
    %725 = vmatprep.subr.mxu0 0.0
    %726 = vmatpush1.msra.mxu0 0.0
    %727 = vmatprep.subr.mxu0 0.0
    %728 = vmatpush1.msra.mxu0 0.0
    %729 = vmatprep.subr.mxu0 0.0
    %730 = vmatpush1.msra.mxu0 0.0
    %731 = vmatprep.subr.mxu0 0.0
    %732 = vmatpush1.msra.mxu0 0.0
    %733 = vmatprep.mubr.f32.mxu0 0.0
    %734 = vmatmul.mubr.f32.gmra.mrb[0].mxu0 %v667
    %v735 = vpop.f32.mrb[0].mxu0
    %v736 = vadd.f32 0.0, %v735
    %v737 = vpop.f32.mrb[0].mxu0
    %738 = vdwg.mxu0
    %v739 = vadd.f32 %v662, %v736
    %v740 = vxor.u32 %v739, 2147483648
    %v741 = vmul.f32 %v740, 1.442695
    %v742 = vpow.pop %v741
    %v743 = vadd.f32 %v742, 1.0
    %v744 = vrcp.pop %v743
    %v745 = vmul.f32 1.0, %v744
    %v746 = vtanh.pop %v739
    %v748 = vrot.slane %v566, 6
    %v750 = vmul.f32 %v745, %v748
    %752 = vrot.lane.b32.xlu0 %v746, 64
    %v753 = vpop.permute.xlu0 %752
    %v755 = vmul.f32 %v745, %v753
    %757 = vrot.lane.b32.xlu0 %v755, 32
    %v758 = vpop.permute.xlu0 %757
    %v760 = vadd.f32 %v750, %v758
    %v761 = vtanh.pop %v760
    %763 = vrot.lane.b32.xlu0 %v761, 64
    %v764 = vpop.permute.xlu0 %763
    %v766 = vmul.f32 %v745, %v764
    %768 = vrot.lane.b32.xlu0 %v766, 32
    %v769 = vpop.permute.xlu0 %768
    %v770 = vsel %vm154, %v769, 0
    %772 = vmatprep.subr.mxu0 0.0
    %773 = vmatpush1.msra.mxu0 %v143
    %774 = vmatprep.subr.mxu0 0.0
    %775 = vmatpush1.msra.mxu0 %v144
    %776 = vmatprep.subr.mxu0 0.0
    %777 = vmatpush1.msra.mxu0 %v145
    %778 = vmatprep.subr.mxu0 0.0
    %779 = vmatpush1.msra.mxu0 %v146
    %780 = vmatprep.subr.mxu0 0.0
    %781 = vmatpush1.msra.mxu0 0.0
    %782 = vmatprep.subr.mxu0 0.0
    %783 = vmatpush1.msra.mxu0 0.0
    %784 = vmatprep.subr.mxu0 0.0
    %785 = vmatpush1.msra.mxu0 0.0
    %786 = vmatprep.subr.mxu0 0.0
    %787 = vmatpush1.msra.mxu0 0.0
    %788 = vmatprep.subr.mxu0 0.0
    %789 = vmatpush1.msra.mxu0 0.0
    %790 = vmatprep.subr.mxu0 0.0
    %791 = vmatpush1.msra.mxu0 0.0
    %792 = vmatprep.subr.mxu0 0.0
    %793 = vmatpush1.msra.mxu0 0.0
    %794 = vmatprep.subr.mxu0 0.0
    %795 = vmatpush1.msra.mxu0 0.0
    %796 = vmatprep.subr.mxu0 0.0
    %797 = vmatpush1.msra.mxu0 0.0
    %798 = vmatprep.subr.mxu0 0.0
    %799 = vmatpush1.msra.mxu0 0.0
    %800 = vmatprep.subr.mxu0 0.0
    %801 = vmatpush1.msra.mxu0 0.0
    %802 = vmatprep.subr.mxu0 0.0
    %803 = vmatpush1.msra.mxu0 0.0
    %804 = vmatprep.subr.mxu0 0.0
    %805 = vmatpush1.msra.mxu0 0.0
    %806 = vmatprep.subr.mxu0 0.0
    %807 = vmatpush1.msra.mxu0 0.0
    %808 = vmatprep.subr.mxu0 0.0
    %809 = vmatpush1.msra.mxu0 0.0
    %810 = vmatprep.subr.mxu0 0.0
    %811 = vmatpush1.msra.mxu0 0.0
    %812 = vmatprep.subr.mxu0 0.0
    %813 = vmatpush1.msra.mxu0 0.0
    %814 = vmatprep.subr.mxu0 0.0
    %815 = vmatpush1.msra.mxu0 0.0
    %816 = vmatprep.subr.mxu0 0.0
    %817 = vmatpush1.msra.mxu0 0.0
    %818 = vmatprep.subr.mxu0 0.0
    %819 = vmatpush1.msra.mxu0 0.0
    %820 = vmatprep.subr.mxu0 0.0
    %821 = vmatpush1.msra.mxu0 0.0
    %822 = vmatprep.subr.mxu0 0.0
    %823 = vmatpush1.msra.mxu0 0.0
    %824 = vmatprep.subr.mxu0 0.0
    %825 = vmatpush1.msra.mxu0 0.0
    %826 = vmatprep.subr.mxu0 0.0
    %827 = vmatpush1.msra.mxu0 0.0
    %828 = vmatprep.subr.mxu0 0.0
    %829 = vmatpush1.msra.mxu0 0.0
    %830 = vmatprep.subr.mxu0 0.0
    %831 = vmatpush1.msra.mxu0 0.0
    %832 = vmatprep.subr.mxu0 0.0
    %833 = vmatpush1.msra.mxu0 0.0
    %834 = vmatprep.subr.mxu0 0.0
    %835 = vmatpush1.msra.mxu0 0.0
    %836 = vmatprep.mubr.f32.mxu0 0.0
    %837 = vmatmul.mubr.f32.gmra.mrb[0].mxu0 %v770
    %v838 = vpop.f32.mrb[0].mxu0
    %v839 = vadd.f32 0.0, %v838
    %v840 = vpop.f32.mrb[0].mxu0
    %841 = vdwg.mxu0
    %v843 = vrot.slane %v839, 6
    %v845 = vadd.f32 %v662, %v843
    %v846 = vxor.u32 %v845, 2147483648
    %v847 = vmul.f32 %v846, 1.442695
    %v848 = vpow.pop %v847
    %v849 = vadd.f32 %v848, 1.0
    %v850 = vrcp.pop %v849
    %v851 = vmul.f32 1.0, %v850
    %v852 = vtanh.pop %v845
    %v854 = vrot.slane %v760, 6
    %v856 = vmul.f32 %v851, %v854
    %858 = vrot.lane.b32.xlu0 %v852, 64
    %v859 = vpop.permute.xlu0 %858
    %v861 = vmul.f32 %v851, %v859
    %863 = vrot.lane.b32.xlu0 %v861, 32
    %v864 = vpop.permute.xlu0 %863
    %v866 = vadd.f32 %v856, %v864
    %v867 = vtanh.pop %v866
    %869 = vrot.lane.b32.xlu0 %v867, 64
    %v870 = vpop.permute.xlu0 %869
    %v872 = vmul.f32 %v851, %v870
    %v874 = vrot.slane %v872, 2
    %875 = vrot.lane.b32.xlu0 %v874, 32
    %v876 = vpop.permute.xlu0 %875
    %v877 = vsel %vm154, %v876, 0
    %879 = vmatprep.subr.mxu0 0.0
    %880 = vmatpush1.msra.mxu0 %v143
    %881 = vmatprep.subr.mxu0 0.0
    %882 = vmatpush1.msra.mxu0 %v144
    %883 = vmatprep.subr.mxu0 0.0
    %884 = vmatpush1.msra.mxu0 %v145
    %885 = vmatprep.subr.mxu0 0.0
    %886 = vmatpush1.msra.mxu0 %v146
    %887 = vmatprep.subr.mxu0 0.0
    %888 = vmatpush1.msra.mxu0 0.0
    %889 = vmatprep.subr.mxu0 0.0
    %890 = vmatpush1.msra.mxu0 0.0
    %891 = vmatprep.subr.mxu0 0.0
    %892 = vmatpush1.msra.mxu0 0.0
    %893 = vmatprep.subr.mxu0 0.0
    %894 = vmatpush1.msra.mxu0 0.0
    %895 = vmatprep.subr.mxu0 0.0
    %896 = vmatpush1.msra.mxu0 0.0
    %897 = vmatprep.subr.mxu0 0.0
    %898 = vmatpush1.msra.mxu0 0.0
    %899 = vmatprep.subr.mxu0 0.0
    %900 = vmatpush1.msra.mxu0 0.0
    %901 = vmatprep.subr.mxu0 0.0
    %902 = vmatpush1.msra.mxu0 0.0
    %903 = vmatprep.subr.mxu0 0.0
    %904 = vmatpush1.msra.mxu0 0.0
    %905 = vmatprep.subr.mxu0 0.0
    %906 = vmatpush1.msra.mxu0 0.0
    %907 = vmatprep.subr.mxu0 0.0
    %908 = vmatpush1.msra.mxu0 0.0
    %909 = vmatprep.subr.mxu0 0.0
    %910 = vmatpush1.msra.mxu0 0.0
    %911 = vmatprep.subr.mxu0 0.0
    %912 = vmatpush1.msra.mxu0 0.0
    %913 = vmatprep.subr.mxu0 0.0
    %914 = vmatpush1.msra.mxu0 0.0
    %915 = vmatprep.subr.mxu0 0.0
    %916 = vmatpush1.msra.mxu0 0.0
    %917 = vmatprep.subr.mxu0 0.0
    %918 = vmatpush1.msra.mxu0 0.0
    %919 = vmatprep.subr.mxu0 0.0
    %920 = vmatpush1.msra.mxu0 0.0
    %921 = vmatprep.subr.mxu0 0.0
    %922 = vmatpush1.msra.mxu0 0.0
    %923 = vmatprep.subr.mxu0 0.0
    %924 = vmatpush1.msra.mxu0 0.0
    %925 = vmatprep.subr.mxu0 0.0
    %926 = vmatpush1.msra.mxu0 0.0
    %927 = vmatprep.subr.mxu0 0.0
    %928 = vmatpush1.msra.mxu0 0.0
    %929 = vmatprep.subr.mxu0 0.0
    %930 = vmatpush1.msra.mxu0 0.0
    %931 = vmatprep.subr.mxu0 0.0
    %932 = vmatpush1.msra.mxu0 0.0
    %933 = vmatprep.subr.mxu0 0.0
    %934 = vmatpush1.msra.mxu0 0.0
    %935 = vmatprep.subr.mxu0 0.0
    %936 = vmatpush1.msra.mxu0 0.0
    %937 = vmatprep.subr.mxu0 0.0
    %938 = vmatpush1.msra.mxu0 0.0
    %939 = vmatprep.subr.mxu0 0.0
    %940 = vmatpush1.msra.mxu0 0.0
    %941 = vmatprep.subr.mxu0 0.0
    %942 = vmatpush1.msra.mxu0 0.0
    %943 = vmatprep.mubr.f32.mxu0 0.0
    %944 = vmatmul.mubr.f32.gmra.mrb[0].mxu0 %v877
    %v945 = vpop.f32.mrb[0].mxu0
    %v946 = vadd.f32 0.0, %v945
    %v947 = vpop.f32.mrb[0].mxu0
    %948 = vdwg.mxu0
    %v950 = vrot.slane %v946, 4
    %v952 = vadd.f32 %v662, %v950
    %v953 = vxor.u32 %v952, 2147483648
    %v954 = vmul.f32 %v953, 1.442695
    %v955 = vpow.pop %v954
    %v956 = vadd.f32 %v955, 1.0
    %v957 = vrcp.pop %v956
    %v958 = vmul.f32 1.0, %v957
    %v959 = vtanh.pop %v952
    %v961 = vrot.slane %v866, 6
    %v963 = vmul.f32 %v958, %v961
    %965 = vrot.lane.b32.xlu0 %v959, 64
    %v966 = vpop.permute.xlu0 %965
    %v968 = vmul.f32 %v958, %v966
    %970 = vrot.lane.b32.xlu0 %v968, 32
    %v971 = vpop.permute.xlu0 %970
    %v973 = vadd.f32 %v963, %v971
    %v974 = vtanh.pop %v973
    %976 = vrot.lane.b32.xlu0 %v974, 64
    %v977 = vpop.permute.xlu0 %976
    %v979 = vmul.f32 %v958, %v977
    %v981 = vrot.slane %v979, 4
    %982 = vrot.lane.b32.xlu0 %v981, 32
    %v983 = vpop.permute.xlu0 %982
    %v984 = vsel %vm154, %v983, 0
    %986 = vmatprep.subr.mxu0 0.0
    %987 = vmatpush1.msra.mxu0 %v143
    %988 = vmatprep.subr.mxu0 0.0
    %989 = vmatpush1.msra.mxu0 %v144
    %990 = vmatprep.subr.mxu0 0.0
    %991 = vmatpush1.msra.mxu0 %v145
    %992 = vmatprep.subr.mxu0 0.0
    %993 = vmatpush1.msra.mxu0 %v146
    %994 = vmatprep.subr.mxu0 0.0
    %995 = vmatpush1.msra.mxu0 0.0
    %996 = vmatprep.subr.mxu0 0.0
    %997 = vmatpush1.msra.mxu0 0.0
    %998 = vmatprep.subr.mxu0 0.0
    %999 = vmatpush1.msra.mxu0 0.0
    %1000 = vmatprep.subr.mxu0 0.0
    %1001 = vmatpush1.msra.mxu0 0.0
    %1002 = vmatprep.subr.mxu0 0.0
    %1003 = vmatpush1.msra.mxu0 0.0
    %1004 = vmatprep.subr.mxu0 0.0
    %1005 = vmatpush1.msra.mxu0 0.0
    %1006 = vmatprep.subr.mxu0 0.0
    %1007 = vmatpush1.msra.mxu0 0.0
    %1008 = vmatprep.subr.mxu0 0.0
    %1009 = vmatpush1.msra.mxu0 0.0
    %1010 = vmatprep.subr.mxu0 0.0
    %1011 = vmatpush1.msra.mxu0 0.0
    %1012 = vmatprep.subr.mxu0 0.0
    %1013 = vmatpush1.msra.mxu0 0.0
    %1014 = vmatprep.subr.mxu0 0.0
    %1015 = vmatpush1.msra.mxu0 0.0
    %1016 = vmatprep.subr.mxu0 0.0
    %1017 = vmatpush1.msra.mxu0 0.0
    %1018 = vmatprep.subr.mxu0 0.0
    %1019 = vmatpush1.msra.mxu0 0.0
    %1020 = vmatprep.subr.mxu0 0.0
    %1021 = vmatpush1.msra.mxu0 0.0
    %1022 = vmatprep.subr.mxu0 0.0
    %1023 = vmatpush1.msra.mxu0 0.0
    %1024 = vmatprep.subr.mxu0 0.0
    %1025 = vmatpush1.msra.mxu0 0.0
    %1026 = vmatprep.subr.mxu0 0.0
    %1027 = vmatpush1.msra.mxu0 0.0
    %1028 = vmatprep.subr.mxu0 0.0
    %1029 = vmatpush1.msra.mxu0 0.0
    %1030 = vmatprep.subr.mxu0 0.0
    %1031 = vmatpush1.msra.mxu0 0.0
    %1032 = vmatprep.subr.mxu0 0.0
    %1033 = vmatpush1.msra.mxu0 0.0
    %1034 = vmatprep.subr.mxu0 0.0
    %1035 = vmatpush1.msra.mxu0 0.0
    %1036 = vmatprep.subr.mxu0 0.0
    %1037 = vmatpush1.msra.mxu0 0.0
    %1038 = vmatprep.subr.mxu0 0.0
    %1039 = vmatpush1.msra.mxu0 0.0
    %1040 = vmatprep.subr.mxu0 0.0
    %1041 = vmatpush1.msra.mxu0 0.0
    %1042 = vmatprep.subr.mxu0 0.0
    %1043 = vmatpush1.msra.mxu0 0.0
    %1044 = vmatprep.subr.mxu0 0.0
    %1045 = vmatpush1.msra.mxu0 0.0
    %1046 = vmatprep.subr.mxu0 0.0
    %1047 = vmatpush1.msra.mxu0 0.0
    %1048 = vmatprep.subr.mxu0 0.0
    %1049 = vmatpush1.msra.mxu0 0.0
    %1050 = vmatprep.mubr.f32.mxu0 0.0
    %1051 = vmatmul.mubr.f32.gmra.mrb[0].mxu0 %v984
    %v1052 = vpop.f32.mrb[0].mxu0
    %v1053 = vadd.f32 0.0, %v1052
    %v1054 = vpop.f32.mrb[0].mxu0
    %1055 = vdwg.mxu0
    %v1057 = vrot.slane %v1053, 2
    %v1059 = vadd.f32 %v662, %v1057
    %v1060 = vxor.u32 %v1059, 2147483648
    %v1061 = vmul.f32 %v1060, 1.442695
    %v1062 = vpow.pop %v1061
    %v1063 = vadd.f32 %v1062, 1.0
    %v1064 = vrcp.pop %v1063
    %v1065 = vmul.f32 1.0, %v1064
    %v1066 = vtanh.pop %v1059
    %v1068 = vrot.slane %v973, 6
    %v1070 = vmul.f32 %v1065, %v1068
    %1072 = vrot.lane.b32.xlu0 %v1066, 64
    %v1073 = vpop.permute.xlu0 %1072
    %v1075 = vmul.f32 %v1065, %v1073
    %1077 = vrot.lane.b32.xlu0 %v1075, 32
    %v1078 = vpop.permute.xlu0 %1077
    %v1080 = vadd.f32 %v1070, %v1078
    %v1081 = vtanh.pop %v1080
    %1083 = vrot.lane.b32.xlu0 %v1081, 64
    %v1084 = vpop.permute.xlu0 %1083
    %v1086 = vmul.f32 %v1065, %v1084
    %v1087 = vsel %vm573, %v766, %v872
    %v1088 = vsel %vm575, %v1087, %v979
    %v1089 = vsel %vm577, %v1088, %v1086
    %1091 = vrot.lane.b32.xlu0 %v1089, 32
    %v1092 = vpop.permute.xlu0 %1091
    %v1093 = vsel %vm154, %v1092, 0
    %1095 = vmatprep.subr.mxu0 0.0
    %1096 = vmatpush1.msra.mxu0 %v147
    %1097 = vmatprep.subr.mxu0 0.0
    %1098 = vmatpush1.msra.mxu0 %v148
    %1099 = vmatprep.subr.mxu0 0.0
    %1100 = vmatpush1.msra.mxu0 %v149
    %1101 = vmatprep.subr.mxu0 0.0
    %1102 = vmatpush1.msra.mxu0 %v150
    %1103 = vmatprep.subr.mxu0 0.0
    %1104 = vmatpush1.msra.mxu0 0.0
    %1105 = vmatprep.subr.mxu0 0.0
    %1106 = vmatpush1.msra.mxu0 0.0
    %1107 = vmatprep.subr.mxu0 0.0
    %1108 = vmatpush1.msra.mxu0 0.0
    %1109 = vmatprep.subr.mxu0 0.0
    %1110 = vmatpush1.msra.mxu0 0.0
    %1111 = vmatprep.subr.mxu0 0.0
    %1112 = vmatpush1.msra.mxu0 0.0
    %1113 = vmatprep.subr.mxu0 0.0
    %1114 = vmatpush1.msra.mxu0 0.0
    %1115 = vmatprep.subr.mxu0 0.0
    %1116 = vmatpush1.msra.mxu0 0.0
    %1117 = vmatprep.subr.mxu0 0.0
    %1118 = vmatpush1.msra.mxu0 0.0
    %1119 = vmatprep.subr.mxu0 0.0
    %1120 = vmatpush1.msra.mxu0 0.0
    %1121 = vmatprep.subr.mxu0 0.0
    %1122 = vmatpush1.msra.mxu0 0.0
    %1123 = vmatprep.subr.mxu0 0.0
    %1124 = vmatpush1.msra.mxu0 0.0
    %1125 = vmatprep.subr.mxu0 0.0
    %1126 = vmatpush1.msra.mxu0 0.0
    %1127 = vmatprep.subr.mxu0 0.0
    %1128 = vmatpush1.msra.mxu0 0.0
    %1129 = vmatprep.subr.mxu0 0.0
    %1130 = vmatpush1.msra.mxu0 0.0
    %1131 = vmatprep.subr.mxu0 0.0
    %1132 = vmatpush1.msra.mxu0 0.0
    %1133 = vmatprep.subr.mxu0 0.0
    %1134 = vmatpush1.msra.mxu0 0.0
    %1135 = vmatprep.subr.mxu0 0.0
    %1136 = vmatpush1.msra.mxu0 0.0
    %1137 = vmatprep.subr.mxu0 0.0
    %1138 = vmatpush1.msra.mxu0 0.0
    %1139 = vmatprep.subr.mxu0 0.0
    %1140 = vmatpush1.msra.mxu0 0.0
    %1141 = vmatprep.subr.mxu0 0.0
    %1142 = vmatpush1.msra.mxu0 0.0
    %1143 = vmatprep.subr.mxu0 0.0
    %1144 = vmatpush1.msra.mxu0 0.0
    %1145 = vmatprep.subr.mxu0 0.0
    %1146 = vmatpush1.msra.mxu0 0.0
    %1147 = vmatprep.subr.mxu0 0.0
    %1148 = vmatpush1.msra.mxu0 0.0
    %1149 = vmatprep.subr.mxu0 0.0
    %1150 = vmatpush1.msra.mxu0 0.0
    %1151 = vmatprep.subr.mxu0 0.0
    %1152 = vmatpush1.msra.mxu0 0.0
    %1153 = vmatprep.subr.mxu0 0.0
    %1154 = vmatpush1.msra.mxu0 0.0
    %1155 = vmatprep.subr.mxu0 0.0
    %1156 = vmatpush1.msra.mxu0 0.0
    %1157 = vmatprep.subr.mxu0 0.0
    %1158 = vmatpush1.msra.mxu0 0.0
    %1159 = vmatprep.mubr.f32.mxu0 0.0
    %1160 = vmatmul.mubr.f32.gmra.mrb[0].mxu0 %v1093
    %v1161 = vpop.f32.mrb[0].mxu0
    %v1162 = vadd.f32 %v583, %v1161
    %v1163 = vpop.f32.mrb[0].mxu0
    %1164 = vdwg.mxu0
    %1165 = vst [vmem:[%s661] sm:$0xff] %v1162
    %s1166 = scalar_lea.vmem [#allocation5], 32
    %v1167 = vld [vmem:[%s1166] sm:$0xff]
    %v1168 = vld [vmem:[%s1166 + $0x8] sm:$0xff]
    %v1169 = vld [vmem:[%s1166 + $0x10] sm:$0xff]
    %v1170 = vld [vmem:[%s1166 + $0x18] sm:$0xff]
    %v1171 = vld [vmem:[#allocation2] sm:$0xff]
    %1172 = vmatprep.subr.mxu0 0.0
    %1173 = vmatpush1.msra.mxu0 %v1167
    %1174 = vmatprep.subr.mxu0 0.0
    %1175 = vmatpush1.msra.mxu0 %v1168
    %1176 = vmatprep.subr.mxu0 0.0
    %1177 = vmatpush1.msra.mxu0 %v1169
    %1178 = vmatprep.subr.mxu0 0.0
    %1179 = vmatpush1.msra.mxu0 %v1170
    %1180 = vmatprep.subr.mxu0 0.0
    %1181 = vmatpush1.msra.mxu0 0.0
    %1182 = vmatprep.subr.mxu0 0.0
    %1183 = vmatpush1.msra.mxu0 0.0
    %1184 = vmatprep.subr.mxu0 0.0
    %1185 = vmatpush1.msra.mxu0 0.0
    %1186 = vmatprep.subr.mxu0 0.0
    %1187 = vmatpush1.msra.mxu0 0.0
    %1188 = vmatprep.subr.mxu0 0.0
    %1189 = vmatpush1.msra.mxu0 0.0
    %1190 = vmatprep.subr.mxu0 0.0
    %1191 = vmatpush1.msra.mxu0 0.0
    %1192 = vmatprep.subr.mxu0 0.0
    %1193 = vmatpush1.msra.mxu0 0.0
    %1194 = vmatprep.subr.mxu0 0.0
    %1195 = vmatpush1.msra.mxu0 0.0
    %1196 = vmatprep.subr.mxu0 0.0
    %1197 = vmatpush1.msra.mxu0 0.0
    %1198 = vmatprep.subr.mxu0 0.0
    %1199 = vmatpush1.msra.mxu0 0.0
    %1200 = vmatprep.subr.mxu0 0.0
    %1201 = vmatpush1.msra.mxu0 0.0
    %1202 = vmatprep.subr.mxu0 0.0
    %1203 = vmatpush1.msra.mxu0 0.0
    %1204 = vmatprep.subr.mxu0 0.0
    %1205 = vmatpush1.msra.mxu0 0.0
    %1206 = vmatprep.subr.mxu0 0.0
    %1207 = vmatpush1.msra.mxu0 0.0
    %1208 = vmatprep.subr.mxu0 0.0
    %1209 = vmatpush1.msra.mxu0 0.0
    %1210 = vmatprep.subr.mxu0 0.0
    %1211 = vmatpush1.msra.mxu0 0.0
    %1212 = vmatprep.subr.mxu0 0.0
    %1213 = vmatpush1.msra.mxu0 0.0
    %1214 = vmatprep.subr.mxu0 0.0
    %1215 = vmatpush1.msra.mxu0 0.0
    %1216 = vmatprep.subr.mxu0 0.0
    %1217 = vmatpush1.msra.mxu0 0.0
    %1218 = vmatprep.subr.mxu0 0.0
    %1219 = vmatpush1.msra.mxu0 0.0
    %1220 = vmatprep.subr.mxu0 0.0
    %1221 = vmatpush1.msra.mxu0 0.0
    %1222 = vmatprep.subr.mxu0 0.0
    %1223 = vmatpush1.msra.mxu0 0.0
    %1224 = vmatprep.subr.mxu0 0.0
    %1225 = vmatpush1.msra.mxu0 0.0
    %1226 = vmatprep.subr.mxu0 0.0
    %1227 = vmatpush1.msra.mxu0 0.0
    %1228 = vmatprep.subr.mxu0 0.0
    %1229 = vmatpush1.msra.mxu0 0.0
    %1230 = vmatprep.subr.mxu0 0.0
    %1231 = vmatpush1.msra.mxu0 0.0
    %1232 = vmatprep.subr.mxu0 0.0
    %1233 = vmatpush1.msra.mxu0 0.0
    %1234 = vmatprep.subr.mxu0 0.0
    %1235 = vmatpush1.msra.mxu0 0.0
    %1236 = vmatprep.mubr.f32.mxu0 0.0
    %1237 = vmatmul.mubr.f32.gmra.mrb[0].mxu0 %v156
    %v1238 = vpop.f32.mrb[0].mxu0
    %v1239 = vadd.f32 0.0, %v1238
    %v1240 = vpop.f32.mrb[0].mxu0
    %1241 = vdwg.mxu0
    %v1242 = vadd.f32 %v1171, %v1239
    %v1243 = vxor.u32 %v1242, 2147483648
    %v1244 = vmul.f32 %v1243, 1.442695
    %v1245 = vpow.pop %v1244
    %v1246 = vadd.f32 %v1245, 1.0
    %v1247 = vrcp.pop %v1246
    %v1248 = vmul.f32 1.0, %v1247
    %v1249 = vtanh.pop %v1242
    %v1250 = vmul.f32 %v1248, 0.0
    %1252 = vrot.lane.b32.xlu0 %v1249, 64
    %v1253 = vpop.permute.xlu0 %1252
    %v1255 = vmul.f32 %v1248, %v1253
    %1257 = vrot.lane.b32.xlu0 %v1255, 32
    %v1258 = vpop.permute.xlu0 %1257
    %v1260 = vadd.f32 %v1250, %v1258
    %v1261 = vtanh.pop %v1260
    %1263 = vrot.lane.b32.xlu0 %v1261, 64
    %v1264 = vpop.permute.xlu0 %1263
    %v1266 = vmul.f32 %v1248, %v1264
    %1268 = vrot.lane.b32.xlu0 %v1266, 32
    %v1269 = vpop.permute.xlu0 %1268
    %v1270 = vsel %vm154, %v1269, 0
    %1272 = vmatprep.subr.mxu0 0.0
    %1273 = vmatpush1.msra.mxu0 %v1167
    %1274 = vmatprep.subr.mxu0 0.0
    %1275 = vmatpush1.msra.mxu0 %v1168
    %1276 = vmatprep.subr.mxu0 0.0
    %1277 = vmatpush1.msra.mxu0 %v1169
    %1278 = vmatprep.subr.mxu0 0.0
    %1279 = vmatpush1.msra.mxu0 %v1170
    %1280 = vmatprep.subr.mxu0 0.0
    %1281 = vmatpush1.msra.mxu0 0.0
    %1282 = vmatprep.subr.mxu0 0.0
    %1283 = vmatpush1.msra.mxu0 0.0
    %1284 = vmatprep.subr.mxu0 0.0
    %1285 = vmatpush1.msra.mxu0 0.0
    %1286 = vmatprep.subr.mxu0 0.0
    %1287 = vmatpush1.msra.mxu0 0.0
    %1288 = vmatprep.subr.mxu0 0.0
    %1289 = vmatpush1.msra.mxu0 0.0
    %1290 = vmatprep.subr.mxu0 0.0
    %1291 = vmatpush1.msra.mxu0 0.0
    %1292 = vmatprep.subr.mxu0 0.0
    %1293 = vmatpush1.msra.mxu0 0.0
    %1294 = vmatprep.subr.mxu0 0.0
    %1295 = vmatpush1.msra.mxu0 0.0
    %1296 = vmatprep.subr.mxu0 0.0
    %1297 = vmatpush1.msra.mxu0 0.0
    %1298 = vmatprep.subr.mxu0 0.0
    %1299 = vmatpush1.msra.mxu0 0.0
    %1300 = vmatprep.subr.mxu0 0.0
    %1301 = vmatpush1.msra.mxu0 0.0
    %1302 = vmatprep.subr.mxu0 0.0
    %1303 = vmatpush1.msra.mxu0 0.0
    %1304 = vmatprep.subr.mxu0 0.0
    %1305 = vmatpush1.msra.mxu0 0.0
    %1306 = vmatprep.subr.mxu0 0.0
    %1307 = vmatpush1.msra.mxu0 0.0
    %1308 = vmatprep.subr.mxu0 0.0
    %1309 = vmatpush1.msra.mxu0 0.0
    %1310 = vmatprep.subr.mxu0 0.0
    %1311 = vmatpush1.msra.mxu0 0.0
    %1312 = vmatprep.subr.mxu0 0.0
    %1313 = vmatpush1.msra.mxu0 0.0
    %1314 = vmatprep.subr.mxu0 0.0
    %1315 = vmatpush1.msra.mxu0 0.0
    %1316 = vmatprep.subr.mxu0 0.0
    %1317 = vmatpush1.msra.mxu0 0.0
    %1318 = vmatprep.subr.mxu0 0.0
    %1319 = vmatpush1.msra.mxu0 0.0
    %1320 = vmatprep.subr.mxu0 0.0
    %1321 = vmatpush1.msra.mxu0 0.0
    %1322 = vmatprep.subr.mxu0 0.0
    %1323 = vmatpush1.msra.mxu0 0.0
    %1324 = vmatprep.subr.mxu0 0.0
    %1325 = vmatpush1.msra.mxu0 0.0
    %1326 = vmatprep.subr.mxu0 0.0
    %1327 = vmatpush1.msra.mxu0 0.0
    %1328 = vmatprep.subr.mxu0 0.0
    %1329 = vmatpush1.msra.mxu0 0.0
    %1330 = vmatprep.subr.mxu0 0.0
    %1331 = vmatpush1.msra.mxu0 0.0
    %1332 = vmatprep.subr.mxu0 0.0
    %1333 = vmatpush1.msra.mxu0 0.0
    %1334 = vmatprep.subr.mxu0 0.0
    %1335 = vmatpush1.msra.mxu0 0.0
    %1336 = vmatprep.mubr.f32.mxu0 0.0
    %1337 = vmatmul.mubr.f32.gmra.mrb[0].mxu0 %v1270
    %v1338 = vpop.f32.mrb[0].mxu0
    %v1339 = vadd.f32 0.0, %v1338
    %v1340 = vpop.f32.mrb[0].mxu0
    %1341 = vdwg.mxu0
    %v1343 = vrot.slane %v1339, 6
    %v1345 = vadd.f32 %v1171, %v1343
    %v1346 = vxor.u32 %v1345, 2147483648
    %v1347 = vmul.f32 %v1346, 1.442695
    %v1348 = vpow.pop %v1347
    %v1349 = vadd.f32 %v1348, 1.0
    %v1350 = vrcp.pop %v1349
    %v1351 = vmul.f32 1.0, %v1350
    %v1352 = vtanh.pop %v1345
    %v1354 = vrot.slane %v1260, 6
    %v1356 = vmul.f32 %v1351, %v1354
    %1358 = vrot.lane.b32.xlu0 %v1352, 64
    %v1359 = vpop.permute.xlu0 %1358
    %v1361 = vmul.f32 %v1351, %v1359
    %1363 = vrot.lane.b32.xlu0 %v1361, 32
    %v1364 = vpop.permute.xlu0 %1363
    %v1366 = vadd.f32 %v1356, %v1364
    %v1367 = vtanh.pop %v1366
    %1369 = vrot.lane.b32.xlu0 %v1367, 64
    %v1370 = vpop.permute.xlu0 %1369
    %v1372 = vmul.f32 %v1351, %v1370
    %v1374 = vrot.slane %v1372, 2
    %1375 = vrot.lane.b32.xlu0 %v1374, 32
    %v1376 = vpop.permute.xlu0 %1375
    %v1377 = vsel %vm154, %v1376, 0
    %1379 = vmatprep.subr.mxu0 0.0
    %1380 = vmatpush1.msra.mxu0 %v1167
    %1381 = vmatprep.subr.mxu0 0.0
    %1382 = vmatpush1.msra.mxu0 %v1168
    %1383 = vmatprep.subr.mxu0 0.0
    %1384 = vmatpush1.msra.mxu0 %v1169
    %1385 = vmatprep.subr.mxu0 0.0
    %1386 = vmatpush1.msra.mxu0 %v1170
    %1387 = vmatprep.subr.mxu0 0.0
    %1388 = vmatpush1.msra.mxu0 0.0
    %1389 = vmatprep.subr.mxu0 0.0
    %1390 = vmatpush1.msra.mxu0 0.0
    %1391 = vmatprep.subr.mxu0 0.0
    %1392 = vmatpush1.msra.mxu0 0.0
    %1393 = vmatprep.subr.mxu0 0.0
    %1394 = vmatpush1.msra.mxu0 0.0
    %1395 = vmatprep.subr.mxu0 0.0
    %1396 = vmatpush1.msra.mxu0 0.0
    %1397 = vmatprep.subr.mxu0 0.0
    %1398 = vmatpush1.msra.mxu0 0.0
    %1399 = vmatprep.subr.mxu0 0.0
    %1400 = vmatpush1.msra.mxu0 0.0
    %1401 = vmatprep.subr.mxu0 0.0
    %1402 = vmatpush1.msra.mxu0 0.0
    %1403 = vmatprep.subr.mxu0 0.0
    %1404 = vmatpush1.msra.mxu0 0.0
    %1405 = vmatprep.subr.mxu0 0.0
    %1406 = vmatpush1.msra.mxu0 0.0
    %1407 = vmatprep.subr.mxu0 0.0
    %1408 = vmatpush1.msra.mxu0 0.0
    %1409 = vmatprep.subr.mxu0 0.0
    %1410 = vmatpush1.msra.mxu0 0.0
    %1411 = vmatprep.subr.mxu0 0.0
    %1412 = vmatpush1.msra.mxu0 0.0
    %1413 = vmatprep.subr.mxu0 0.0
    %1414 = vmatpush1.msra.mxu0 0.0
    %1415 = vmatprep.subr.mxu0 0.0
    %1416 = vmatpush1.msra.mxu0 0.0
    %1417 = vmatprep.subr.mxu0 0.0
    %1418 = vmatpush1.msra.mxu0 0.0
    %1419 = vmatprep.subr.mxu0 0.0
    %1420 = vmatpush1.msra.mxu0 0.0
    %1421 = vmatprep.subr.mxu0 0.0
    %1422 = vmatpush1.msra.mxu0 0.0
    %1423 = vmatprep.subr.mxu0 0.0
    %1424 = vmatpush1.msra.mxu0 0.0
    %1425 = vmatprep.subr.mxu0 0.0
    %1426 = vmatpush1.msra.mxu0 0.0
    %1427 = vmatprep.subr.mxu0 0.0
    %1428 = vmatpush1.msra.mxu0 0.0
    %1429 = vmatprep.subr.mxu0 0.0
    %1430 = vmatpush1.msra.mxu0 0.0
    %1431 = vmatprep.subr.mxu0 0.0
    %1432 = vmatpush1.msra.mxu0 0.0
    %1433 = vmatprep.subr.mxu0 0.0
    %1434 = vmatpush1.msra.mxu0 0.0
    %1435 = vmatprep.subr.mxu0 0.0
    %1436 = vmatpush1.msra.mxu0 0.0
    %1437 = vmatprep.subr.mxu0 0.0
    %1438 = vmatpush1.msra.mxu0 0.0
    %1439 = vmatprep.subr.mxu0 0.0
    %1440 = vmatpush1.msra.mxu0 0.0
    %1441 = vmatprep.subr.mxu0 0.0
    %1442 = vmatpush1.msra.mxu0 0.0
    %1443 = vmatprep.mubr.f32.mxu0 0.0
    %1444 = vmatmul.mubr.f32.gmra.mrb[0].mxu0 %v1377
    %v1445 = vpop.f32.mrb[0].mxu0
    %v1446 = vadd.f32 0.0, %v1445
    %v1447 = vpop.f32.mrb[0].mxu0
    %1448 = vdwg.mxu0
    %v1450 = vrot.slane %v1446, 4
    %v1452 = vadd.f32 %v1171, %v1450
    %v1453 = vxor.u32 %v1452, 2147483648
    %v1454 = vmul.f32 %v1453, 1.442695
    %v1455 = vpow.pop %v1454
    %v1456 = vadd.f32 %v1455, 1.0
    %v1457 = vrcp.pop %v1456
    %v1458 = vmul.f32 1.0, %v1457
    %v1459 = vtanh.pop %v1452
    %v1461 = vrot.slane %v1366, 6
    %v1463 = vmul.f32 %v1458, %v1461
    %1465 = vrot.lane.b32.xlu0 %v1459, 64
    %v1466 = vpop.permute.xlu0 %1465
    %v1468 = vmul.f32 %v1458, %v1466
    %1470 = vrot.lane.b32.xlu0 %v1468, 32
    %v1471 = vpop.permute.xlu0 %1470
    %v1473 = vadd.f32 %v1463, %v1471
    %v1474 = vtanh.pop %v1473
    %1476 = vrot.lane.b32.xlu0 %v1474, 64
    %v1477 = vpop.permute.xlu0 %1476
    %v1479 = vmul.f32 %v1458, %v1477
    %v1481 = vrot.slane %v1479, 4
    %1482 = vrot.lane.b32.xlu0 %v1481, 32
    %v1483 = vpop.permute.xlu0 %1482
    %v1484 = vsel %vm154, %v1483, 0
    %1486 = vmatprep.subr.mxu0 0.0
    %1487 = vmatpush1.msra.mxu0 %v1167
    %1488 = vmatprep.subr.mxu0 0.0
    %1489 = vmatpush1.msra.mxu0 %v1168
    %1490 = vmatprep.subr.mxu0 0.0
    %1491 = vmatpush1.msra.mxu0 %v1169
    %1492 = vmatprep.subr.mxu0 0.0
    %1493 = vmatpush1.msra.mxu0 %v1170
    %1494 = vmatprep.subr.mxu0 0.0
    %1495 = vmatpush1.msra.mxu0 0.0
    %1496 = vmatprep.subr.mxu0 0.0
    %1497 = vmatpush1.msra.mxu0 0.0
    %1498 = vmatprep.subr.mxu0 0.0
    %1499 = vmatpush1.msra.mxu0 0.0
    %1500 = vmatprep.subr.mxu0 0.0
    %1501 = vmatpush1.msra.mxu0 0.0
    %1502 = vmatprep.subr.mxu0 0.0
    %1503 = vmatpush1.msra.mxu0 0.0
    %1504 = vmatprep.subr.mxu0 0.0
    %1505 = vmatpush1.msra.mxu0 0.0
    %1506 = vmatprep.subr.mxu0 0.0
    %1507 = vmatpush1.msra.mxu0 0.0
    %1508 = vmatprep.subr.mxu0 0.0
    %1509 = vmatpush1.msra.mxu0 0.0
    %1510 = vmatprep.subr.mxu0 0.0
    %1511 = vmatpush1.msra.mxu0 0.0
    %1512 = vmatprep.subr.mxu0 0.0
    %1513 = vmatpush1.msra.mxu0 0.0
    %1514 = vmatprep.subr.mxu0 0.0
    %1515 = vmatpush1.msra.mxu0 0.0
    %1516 = vmatprep.subr.mxu0 0.0
    %1517 = vmatpush1.msra.mxu0 0.0
    %1518 = vmatprep.subr.mxu0 0.0
    %1519 = vmatpush1.msra.mxu0 0.0
    %1520 = vmatprep.subr.mxu0 0.0
    %1521 = vmatpush1.msra.mxu0 0.0
    %1522 = vmatprep.subr.mxu0 0.0
    %1523 = vmatpush1.msra.mxu0 0.0
    %1524 = vmatprep.subr.mxu0 0.0
    %1525 = vmatpush1.msra.mxu0 0.0
    %1526 = vmatprep.subr.mxu0 0.0
    %1527 = vmatpush1.msra.mxu0 0.0
    %1528 = vmatprep.subr.mxu0 0.0
    %1529 = vmatpush1.msra.mxu0 0.0
    %1530 = vmatprep.subr.mxu0 0.0
    %1531 = vmatpush1.msra.mxu0 0.0
    %1532 = vmatprep.subr.mxu0 0.0
    %1533 = vmatpush1.msra.mxu0 0.0
    %1534 = vmatprep.subr.mxu0 0.0
    %1535 = vmatpush1.msra.mxu0 0.0
    %1536 = vmatprep.subr.mxu0 0.0
    %1537 = vmatpush1.msra.mxu0 0.0
    %1538 = vmatprep.subr.mxu0 0.0
    %1539 = vmatpush1.msra.mxu0 0.0
    %1540 = vmatprep.subr.mxu0 0.0
    %1541 = vmatpush1.msra.mxu0 0.0
    %1542 = vmatprep.subr.mxu0 0.0
    %1543 = vmatpush1.msra.mxu0 0.0
    %1544 = vmatprep.subr.mxu0 0.0
    %1545 = vmatpush1.msra.mxu0 0.0
    %1546 = vmatprep.subr.mxu0 0.0
    %1547 = vmatpush1.msra.mxu0 0.0
    %1548 = vmatprep.subr.mxu0 0.0
    %1549 = vmatpush1.msra.mxu0 0.0
    %1550 = vmatprep.mubr.f32.mxu0 0.0
    %1551 = vmatmul.mubr.f32.gmra.mrb[0].mxu0 %v1484
    %v1552 = vpop.f32.mrb[0].mxu0
    %v1553 = vadd.f32 0.0, %v1552
    %v1554 = vpop.f32.mrb[0].mxu0
    %1555 = vdwg.mxu0
    %v1557 = vrot.slane %v1553, 2
    %v1559 = vadd.f32 %v1171, %v1557
    %v1560 = vxor.u32 %v1559, 2147483648
    %v1561 = vmul.f32 %v1560, 1.442695
    %v1562 = vpow.pop %v1561
    %v1563 = vadd.f32 %v1562, 1.0
    %v1564 = vrcp.pop %v1563
    %v1565 = vmul.f32 1.0, %v1564
    %v1566 = vtanh.pop %v1559
    %v1568 = vrot.slane %v1473, 6
    %v1570 = vmul.f32 %v1565, %v1568
    %1572 = vrot.lane.b32.xlu0 %v1566, 64
    %v1573 = vpop.permute.xlu0 %1572
    %v1575 = vmul.f32 %v1565, %v1573
    %1577 = vrot.lane.b32.xlu0 %v1575, 32
    %v1578 = vpop.permute.xlu0 %1577
    %v1580 = vadd.f32 %v1570, %v1578
    %v1581 = vtanh.pop %v1580
    %1583 = vrot.lane.b32.xlu0 %v1581, 64
    %v1584 = vpop.permute.xlu0 %1583
    %v1586 = vmul.f32 %v1565, %v1584
    %v1587 = vsel %vm573, %v1266, %v1372
    %v1588 = vsel %vm575, %v1587, %v1479
    %v1589 = vsel %vm577, %v1588, %v1586
    %1591 = vrot.lane.b32.xlu0 %v1589, 32
    %v1592 = vpop.permute.xlu0 %1591
    %1594 = vst.msk [vmem:[%s5] sm:$0xff] %vm154, %v1592
    %v1595 = vld [vmem:[%s661] sm:$0xff]
    %v1597 = vrot.slane %v1586, 6
    %1598 = vrot.lane.b32.xlu0 %v1597, 32
    %v1599 = vpop.permute.xlu0 %1598
    %v1600 = vsel %vm154, %v1599, 0
    %1602 = vmatprep.subr.mxu0 0.0
    %1603 = vmatpush1.msra.mxu0 %v1167
    %1604 = vmatprep.subr.mxu0 0.0
    %1605 = vmatpush1.msra.mxu0 %v1168
    %1606 = vmatprep.subr.mxu0 0.0
    %1607 = vmatpush1.msra.mxu0 %v1169
    %1608 = vmatprep.subr.mxu0 0.0
    %1609 = vmatpush1.msra.mxu0 %v1170
    %1610 = vmatprep.subr.mxu0 0.0
    %1611 = vmatpush1.msra.mxu0 0.0
    %1612 = vmatprep.subr.mxu0 0.0
    %1613 = vmatpush1.msra.mxu0 0.0
    %1614 = vmatprep.subr.mxu0 0.0
    %1615 = vmatpush1.msra.mxu0 0.0
    %1616 = vmatprep.subr.mxu0 0.0
    %1617 = vmatpush1.msra.mxu0 0.0
    %1618 = vmatprep.subr.mxu0 0.0
    %1619 = vmatpush1.msra.mxu0 0.0
    %1620 = vmatprep.subr.mxu0 0.0
    %1621 = vmatpush1.msra.mxu0 0.0
    %1622 = vmatprep.subr.mxu0 0.0
    %1623 = vmatpush1.msra.mxu0 0.0
    %1624 = vmatprep.subr.mxu0 0.0
    %1625 = vmatpush1.msra.mxu0 0.0
    %1626 = vmatprep.subr.mxu0 0.0
    %1627 = vmatpush1.msra.mxu0 0.0
    %1628 = vmatprep.subr.mxu0 0.0
    %1629 = vmatpush1.msra.mxu0 0.0
    %1630 = vmatprep.subr.mxu0 0.0
    %1631 = vmatpush1.msra.mxu0 0.0
    %1632 = vmatprep.subr.mxu0 0.0
    %1633 = vmatpush1.msra.mxu0 0.0
    %1634 = vmatprep.subr.mxu0 0.0
    %1635 = vmatpush1.msra.mxu0 0.0
    %1636 = vmatprep.subr.mxu0 0.0
    %1637 = vmatpush1.msra.mxu0 0.0
    %1638 = vmatprep.subr.mxu0 0.0
    %1639 = vmatpush1.msra.mxu0 0.0
    %1640 = vmatprep.subr.mxu0 0.0
    %1641 = vmatpush1.msra.mxu0 0.0
    %1642 = vmatprep.subr.mxu0 0.0
    %1643 = vmatpush1.msra.mxu0 0.0
    %1644 = vmatprep.subr.mxu0 0.0
    %1645 = vmatpush1.msra.mxu0 0.0
    %1646 = vmatprep.subr.mxu0 0.0
    %1647 = vmatpush1.msra.mxu0 0.0
    %1648 = vmatprep.subr.mxu0 0.0
    %1649 = vmatpush1.msra.mxu0 0.0
    %1650 = vmatprep.subr.mxu0 0.0
    %1651 = vmatpush1.msra.mxu0 0.0
    %1652 = vmatprep.subr.mxu0 0.0
    %1653 = vmatpush1.msra.mxu0 0.0
    %1654 = vmatprep.subr.mxu0 0.0
    %1655 = vmatpush1.msra.mxu0 0.0
    %1656 = vmatprep.subr.mxu0 0.0
    %1657 = vmatpush1.msra.mxu0 0.0
    %1658 = vmatprep.subr.mxu0 0.0
    %1659 = vmatpush1.msra.mxu0 0.0
    %1660 = vmatprep.subr.mxu0 0.0
    %1661 = vmatpush1.msra.mxu0 0.0
    %1662 = vmatprep.subr.mxu0 0.0
    %1663 = vmatpush1.msra.mxu0 0.0
    %1664 = vmatprep.subr.mxu0 0.0
    %1665 = vmatpush1.msra.mxu0 0.0
    %1666 = vmatprep.mubr.f32.mxu0 0.0
    %1667 = vmatmul.mubr.f32.gmra.mrb[0].mxu0 %v1600
    %v1668 = vpop.f32.mrb[0].mxu0
    %v1669 = vadd.f32 0.0, %v1668
    %v1670 = vpop.f32.mrb[0].mxu0
    %1671 = vdwg.mxu0
    %v1672 = vadd.f32 %v1595, %v1669
    %v1673 = vxor.u32 %v1672, 2147483648
    %v1674 = vmul.f32 %v1673, 1.442695
    %v1675 = vpow.pop %v1674
    %v1676 = vadd.f32 %v1675, 1.0
    %v1677 = vrcp.pop %v1676
    %v1678 = vmul.f32 1.0, %v1677
    %v1679 = vtanh.pop %v1672
    %v1681 = vrot.slane %v1580, 6
    %v1683 = vmul.f32 %v1678, %v1681
    %1685 = vrot.lane.b32.xlu0 %v1679, 64
    %v1686 = vpop.permute.xlu0 %1685
    %v1688 = vmul.f32 %v1678, %v1686
    %1690 = vrot.lane.b32.xlu0 %v1688, 32
    %v1691 = vpop.permute.xlu0 %1690
    %v1693 = vadd.f32 %v1683, %v1691
    %v1694 = vtanh.pop %v1693
    %1696 = vrot.lane.b32.xlu0 %v1694, 64
    %v1697 = vpop.permute.xlu0 %1696
    %v1699 = vmul.f32 %v1678, %v1697
    %1701 = vrot.lane.b32.xlu0 %v1699, 32
    %v1702 = vpop.permute.xlu0 %1701
    %v1703 = vsel %vm154, %v1702, 0
    %1705 = vmatprep.subr.mxu0 0.0
    %1706 = vmatpush1.msra.mxu0 %v1167
    %1707 = vmatprep.subr.mxu0 0.0
    %1708 = vmatpush1.msra.mxu0 %v1168
    %1709 = vmatprep.subr.mxu0 0.0
    %1710 = vmatpush1.msra.mxu0 %v1169
    %1711 = vmatprep.subr.mxu0 0.0
    %1712 = vmatpush1.msra.mxu0 %v1170
    %1713 = vmatprep.subr.mxu0 0.0
    %1714 = vmatpush1.msra.mxu0 0.0
    %1715 = vmatprep.subr.mxu0 0.0
    %1716 = vmatpush1.msra.mxu0 0.0
    %1717 = vmatprep.subr.mxu0 0.0
    %1718 = vmatpush1.msra.mxu0 0.0
    %1719 = vmatprep.subr.mxu0 0.0
    %1720 = vmatpush1.msra.mxu0 0.0
    %1721 = vmatprep.subr.mxu0 0.0
    %1722 = vmatpush1.msra.mxu0 0.0
    %1723 = vmatprep.subr.mxu0 0.0
    %1724 = vmatpush1.msra.mxu0 0.0
    %1725 = vmatprep.subr.mxu0 0.0
    %1726 = vmatpush1.msra.mxu0 0.0
    %1727 = vmatprep.subr.mxu0 0.0
    %1728 = vmatpush1.msra.mxu0 0.0
    %1729 = vmatprep.subr.mxu0 0.0
    %1730 = vmatpush1.msra.mxu0 0.0
    %1731 = vmatprep.subr.mxu0 0.0
    %1732 = vmatpush1.msra.mxu0 0.0
    %1733 = vmatprep.subr.mxu0 0.0
    %1734 = vmatpush1.msra.mxu0 0.0
    %1735 = vmatprep.subr.mxu0 0.0
    %1736 = vmatpush1.msra.mxu0 0.0
    %1737 = vmatprep.subr.mxu0 0.0
    %1738 = vmatpush1.msra.mxu0 0.0
    %1739 = vmatprep.subr.mxu0 0.0
    %1740 = vmatpush1.msra.mxu0 0.0
    %1741 = vmatprep.subr.mxu0 0.0
    %1742 = vmatpush1.msra.mxu0 0.0
    %1743 = vmatprep.subr.mxu0 0.0
    %1744 = vmatpush1.msra.mxu0 0.0
    %1745 = vmatprep.subr.mxu0 0.0
    %1746 = vmatpush1.msra.mxu0 0.0
    %1747 = vmatprep.subr.mxu0 0.0
    %1748 = vmatpush1.msra.mxu0 0.0
    %1749 = vmatprep.subr.mxu0 0.0
    %1750 = vmatpush1.msra.mxu0 0.0
    %1751 = vmatprep.subr.mxu0 0.0
    %1752 = vmatpush1.msra.mxu0 0.0
    %1753 = vmatprep.subr.mxu0 0.0
    %1754 = vmatpush1.msra.mxu0 0.0
    %1755 = vmatprep.subr.mxu0 0.0
    %1756 = vmatpush1.msra.mxu0 0.0
    %1757 = vmatprep.subr.mxu0 0.0
    %1758 = vmatpush1.msra.mxu0 0.0
    %1759 = vmatprep.subr.mxu0 0.0
    %1760 = vmatpush1.msra.mxu0 0.0
    %1761 = vmatprep.subr.mxu0 0.0
    %1762 = vmatpush1.msra.mxu0 0.0
    %1763 = vmatprep.subr.mxu0 0.0
    %1764 = vmatpush1.msra.mxu0 0.0
    %1765 = vmatprep.subr.mxu0 0.0
    %1766 = vmatpush1.msra.mxu0 0.0
    %1767 = vmatprep.subr.mxu0 0.0
    %1768 = vmatpush1.msra.mxu0 0.0
    %1769 = vmatprep.mubr.f32.mxu0 0.0
    %1770 = vmatmul.mubr.f32.gmra.mrb[0].mxu0 %v1703
    %v1771 = vpop.f32.mrb[0].mxu0
    %v1772 = vadd.f32 0.0, %v1771
    %v1773 = vpop.f32.mrb[0].mxu0
    %1774 = vdwg.mxu0
    %v1776 = vrot.slane %v1772, 6
    %v1778 = vadd.f32 %v1595, %v1776
    %v1779 = vxor.u32 %v1778, 2147483648
    %v1780 = vmul.f32 %v1779, 1.442695
    %v1781 = vpow.pop %v1780
    %v1782 = vadd.f32 %v1781, 1.0
    %v1783 = vrcp.pop %v1782
    %v1784 = vmul.f32 1.0, %v1783
    %v1785 = vtanh.pop %v1778
    %v1787 = vrot.slane %v1693, 6
    %v1789 = vmul.f32 %v1784, %v1787
    %1791 = vrot.lane.b32.xlu0 %v1785, 64
    %v1792 = vpop.permute.xlu0 %1791
    %v1794 = vmul.f32 %v1784, %v1792
    %1796 = vrot.lane.b32.xlu0 %v1794, 32
    %v1797 = vpop.permute.xlu0 %1796
    %v1799 = vadd.f32 %v1789, %v1797
    %v1800 = vtanh.pop %v1799
    %1802 = vrot.lane.b32.xlu0 %v1800, 64
    %v1803 = vpop.permute.xlu0 %1802
    %v1805 = vmul.f32 %v1784, %v1803
    %v1807 = vrot.slane %v1805, 2
    %1808 = vrot.lane.b32.xlu0 %v1807, 32
    %v1809 = vpop.permute.xlu0 %1808
    %v1810 = vsel %vm154, %v1809, 0
    %1812 = vmatprep.subr.mxu0 0.0
    %1813 = vmatpush1.msra.mxu0 %v1167
    %1814 = vmatprep.subr.mxu0 0.0
    %1815 = vmatpush1.msra.mxu0 %v1168
    %1816 = vmatprep.subr.mxu0 0.0
    %1817 = vmatpush1.msra.mxu0 %v1169
    %1818 = vmatprep.subr.mxu0 0.0
    %1819 = vmatpush1.msra.mxu0 %v1170
    %1820 = vmatprep.subr.mxu0 0.0
    %1821 = vmatpush1.msra.mxu0 0.0
    %1822 = vmatprep.subr.mxu0 0.0
    %1823 = vmatpush1.msra.mxu0 0.0
    %1824 = vmatprep.subr.mxu0 0.0
    %1825 = vmatpush1.msra.mxu0 0.0
    %1826 = vmatprep.subr.mxu0 0.0
    %1827 = vmatpush1.msra.mxu0 0.0
    %1828 = vmatprep.subr.mxu0 0.0
    %1829 = vmatpush1.msra.mxu0 0.0
    %1830 = vmatprep.subr.mxu0 0.0
    %1831 = vmatpush1.msra.mxu0 0.0
    %1832 = vmatprep.subr.mxu0 0.0
    %1833 = vmatpush1.msra.mxu0 0.0
    %1834 = vmatprep.subr.mxu0 0.0
    %1835 = vmatpush1.msra.mxu0 0.0
    %1836 = vmatprep.subr.mxu0 0.0
    %1837 = vmatpush1.msra.mxu0 0.0
    %1838 = vmatprep.subr.mxu0 0.0
    %1839 = vmatpush1.msra.mxu0 0.0
    %1840 = vmatprep.subr.mxu0 0.0
    %1841 = vmatpush1.msra.mxu0 0.0
    %1842 = vmatprep.subr.mxu0 0.0
    %1843 = vmatpush1.msra.mxu0 0.0
    %1844 = vmatprep.subr.mxu0 0.0
    %1845 = vmatpush1.msra.mxu0 0.0
    %1846 = vmatprep.subr.mxu0 0.0
    %1847 = vmatpush1.msra.mxu0 0.0
    %1848 = vmatprep.subr.mxu0 0.0
    %1849 = vmatpush1.msra.mxu0 0.0
    %1850 = vmatprep.subr.mxu0 0.0
    %1851 = vmatpush1.msra.mxu0 0.0
    %1852 = vmatprep.subr.mxu0 0.0
    %1853 = vmatpush1.msra.mxu0 0.0
    %1854 = vmatprep.subr.mxu0 0.0
    %1855 = vmatpush1.msra.mxu0 0.0
    %1856 = vmatprep.subr.mxu0 0.0
    %1857 = vmatpush1.msra.mxu0 0.0
    %1858 = vmatprep.subr.mxu0 0.0
    %1859 = vmatpush1.msra.mxu0 0.0
    %1860 = vmatprep.subr.mxu0 0.0
    %1861 = vmatpush1.msra.mxu0 0.0
    %1862 = vmatprep.subr.mxu0 0.0
    %1863 = vmatpush1.msra.mxu0 0.0
    %1864 = vmatprep.subr.mxu0 0.0
    %1865 = vmatpush1.msra.mxu0 0.0
    %1866 = vmatprep.subr.mxu0 0.0
    %1867 = vmatpush1.msra.mxu0 0.0
    %1868 = vmatprep.subr.mxu0 0.0
    %1869 = vmatpush1.msra.mxu0 0.0
    %1870 = vmatprep.subr.mxu0 0.0
    %1871 = vmatpush1.msra.mxu0 0.0
    %1872 = vmatprep.subr.mxu0 0.0
    %1873 = vmatpush1.msra.mxu0 0.0
    %1874 = vmatprep.subr.mxu0 0.0
    %1875 = vmatpush1.msra.mxu0 0.0
    %1876 = vmatprep.mubr.f32.mxu0 0.0
    %1877 = vmatmul.mubr.f32.gmra.mrb[0].mxu0 %v1810
    %v1878 = vpop.f32.mrb[0].mxu0
    %v1879 = vadd.f32 0.0, %v1878
    %v1880 = vpop.f32.mrb[0].mxu0
    %1881 = vdwg.mxu0
    %v1883 = vrot.slane %v1879, 4
    %v1885 = vadd.f32 %v1595, %v1883
    %v1886 = vxor.u32 %v1885, 2147483648
    %v1887 = vmul.f32 %v1886, 1.442695
    %v1888 = vpow.pop %v1887
    %v1889 = vadd.f32 %v1888, 1.0
    %v1890 = vrcp.pop %v1889
    %v1891 = vmul.f32 1.0, %v1890
    %v1892 = vtanh.pop %v1885
    %v1894 = vrot.slane %v1799, 6
    %v1896 = vmul.f32 %v1891, %v1894
    %1898 = vrot.lane.b32.xlu0 %v1892, 64
    %v1899 = vpop.permute.xlu0 %1898
    %v1901 = vmul.f32 %v1891, %v1899
    %1903 = vrot.lane.b32.xlu0 %v1901, 32
    %v1904 = vpop.permute.xlu0 %1903
    %v1906 = vadd.f32 %v1896, %v1904
    %v1907 = vtanh.pop %v1906
    %1909 = vrot.lane.b32.xlu0 %v1907, 64
    %v1910 = vpop.permute.xlu0 %1909
    %v1912 = vmul.f32 %v1891, %v1910
    %v1914 = vrot.slane %v1912, 4
    %1915 = vrot.lane.b32.xlu0 %v1914, 32
    %v1916 = vpop.permute.xlu0 %1915
    %v1917 = vsel %vm154, %v1916, 0
    %1919 = vmatprep.subr.mxu0 0.0
    %1920 = vmatpush1.msra.mxu0 %v1167
    %1921 = vmatprep.subr.mxu0 0.0
    %1922 = vmatpush1.msra.mxu0 %v1168
    %1923 = vmatprep.subr.mxu0 0.0
    %1924 = vmatpush1.msra.mxu0 %v1169
    %1925 = vmatprep.subr.mxu0 0.0
    %1926 = vmatpush1.msra.mxu0 %v1170
    %1927 = vmatprep.subr.mxu0 0.0
    %1928 = vmatpush1.msra.mxu0 0.0
    %1929 = vmatprep.subr.mxu0 0.0
    %1930 = vmatpush1.msra.mxu0 0.0
    %1931 = vmatprep.subr.mxu0 0.0
    %1932 = vmatpush1.msra.mxu0 0.0
    %1933 = vmatprep.subr.mxu0 0.0
    %1934 = vmatpush1.msra.mxu0 0.0
    %1935 = vmatprep.subr.mxu0 0.0
    %1936 = vmatpush1.msra.mxu0 0.0
    %1937 = vmatprep.subr.mxu0 0.0
    %1938 = vmatpush1.msra.mxu0 0.0
    %1939 = vmatprep.subr.mxu0 0.0
    %1940 = vmatpush1.msra.mxu0 0.0
    %1941 = vmatprep.subr.mxu0 0.0
    %1942 = vmatpush1.msra.mxu0 0.0
    %1943 = vmatprep.subr.mxu0 0.0
    %1944 = vmatpush1.msra.mxu0 0.0
    %1945 = vmatprep.subr.mxu0 0.0
    %1946 = vmatpush1.msra.mxu0 0.0
    %1947 = vmatprep.subr.mxu0 0.0
    %1948 = vmatpush1.msra.mxu0 0.0
    %1949 = vmatprep.subr.mxu0 0.0
    %1950 = vmatpush1.msra.mxu0 0.0
    %1951 = vmatprep.subr.mxu0 0.0
    %1952 = vmatpush1.msra.mxu0 0.0
    %1953 = vmatprep.subr.mxu0 0.0
    %1954 = vmatpush1.msra.mxu0 0.0
    %1955 = vmatprep.subr.mxu0 0.0
    %1956 = vmatpush1.msra.mxu0 0.0
    %1957 = vmatprep.subr.mxu0 0.0
    %1958 = vmatpush1.msra.mxu0 0.0
    %1959 = vmatprep.subr.mxu0 0.0
    %1960 = vmatpush1.msra.mxu0 0.0
    %1961 = vmatprep.subr.mxu0 0.0
    %1962 = vmatpush1.msra.mxu0 0.0
    %1963 = vmatprep.subr.mxu0 0.0
    %1964 = vmatpush1.msra.mxu0 0.0
    %1965 = vmatprep.subr.mxu0 0.0
    %1966 = vmatpush1.msra.mxu0 0.0
    %1967 = vmatprep.subr.mxu0 0.0
    %1968 = vmatpush1.msra.mxu0 0.0
    %1969 = vmatprep.subr.mxu0 0.0
    %1970 = vmatpush1.msra.mxu0 0.0
    %1971 = vmatprep.subr.mxu0 0.0
    %1972 = vmatpush1.msra.mxu0 0.0
    %1973 = vmatprep.subr.mxu0 0.0
    %1974 = vmatpush1.msra.mxu0 0.0
    %1975 = vmatprep.subr.mxu0 0.0
    %1976 = vmatpush1.msra.mxu0 0.0
    %1977 = vmatprep.subr.mxu0 0.0
    %1978 = vmatpush1.msra.mxu0 0.0
    %1979 = vmatprep.subr.mxu0 0.0
    %1980 = vmatpush1.msra.mxu0 0.0
    %1981 = vmatprep.subr.mxu0 0.0
    %1982 = vmatpush1.msra.mxu0 0.0
    %1983 = vmatprep.mubr.f32.mxu0 0.0
    %1984 = vmatmul.mubr.f32.gmra.mrb[0].mxu0 %v1917
    %v1985 = vpop.f32.mrb[0].mxu0
    %v1986 = vadd.f32 0.0, %v1985
    %v1987 = vpop.f32.mrb[0].mxu0
    %1988 = vdwg.mxu0
    %v1990 = vrot.slane %v1986, 2
    %v1992 = vadd.f32 %v1595, %v1990
    %v1993 = vxor.u32 %v1992, 2147483648
    %v1994 = vmul.f32 %v1993, 1.442695
    %v1995 = vpow.pop %v1994
    %v1996 = vadd.f32 %v1995, 1.0
    %v1997 = vrcp.pop %v1996
    %v1998 = vmul.f32 1.0, %v1997
    %v1999 = vtanh.pop %v1992
    %v2001 = vrot.slane %v1906, 6
    %v2003 = vmul.f32 %v1998, %v2001
    %2005 = vrot.lane.b32.xlu0 %v1999, 64
    %v2006 = vpop.permute.xlu0 %2005
    %v2008 = vmul.f32 %v1998, %v2006
    %2010 = vrot.lane.b32.xlu0 %v2008, 32
    %v2011 = vpop.permute.xlu0 %2010
    %v2013 = vadd.f32 %v2003, %v2011
    %v2014 = vtanh.pop %v2013
    %2016 = vrot.lane.b32.xlu0 %v2014, 64
    %v2017 = vpop.permute.xlu0 %2016
    %v2019 = vmul.f32 %v1998, %v2017
    %v2020 = vsel %vm573, %v1699, %v1805
    %v2021 = vsel %vm575, %v2020, %v1912
    %v2022 = vsel %vm577, %v2021, %v2019
    %2024 = vrot.lane.b32.xlu0 %v2022, 32
    %v2025 = vpop.permute.xlu0 %2024
    %s2027 = scalar_lea.vmem %s5, 8
    %2028 = vst.msk [vmem:[%s2027] sm:$0xff] %vm154, %v2025
    // Predicated region
    $region30: #{_lstm4_forward.1} parent=1 // pred_check
      _
    $region31: #{_lstm4_forward.1} parent=1 // pred_check_branch
      %2030 = sbr.rel (0) target = $region33
    $region32: #{_lstm4_forward.1} parent=1 // pred_region
      _
    $region33: #{_lstm4_forward.1} parent=1 // pred_fallthru
      _
    // Predicated region
    $region34: #{_lstm4_forward.1} parent=1 // pred_check
      _
    $region35: #{_lstm4_forward.1} parent=1 // pred_check_branch
      %2032 = sbr.rel (0) target = $region37
    $region36: #{_lstm4_forward.1} parent=1 // pred_region
      _
    $region37: #{_lstm4_forward.1} parent=1 // pred_fallthru
      _
    %2033 = vsyncpa [#allocation4], 1
    %2034 = vsyncpa [#allocation6], 1

</llo_original>
